<compile_context>
chip_gen: v7x
topology: tpu7x:2x2x1
jax: 0.10.0
libtpu: 0.0.40
codegen_flags: <defaults>
</compile_context>

<pallas_src>
import jax
import jax.numpy as jnp
from jax.experimental import pallas as pl
from jax.experimental.pallas import tpu as pltpu

# ----------------------------- config (small, consistent with the module) -----
BATCH = 2
NUM_FRAMES = 8          # seq length
IMG_FEATURE_DIM = 32    # == hidden_size so per-layer weights can be stacked
HIDDEN_SIZE = 32
NUM_LAYERS = 2
NUM_CLASS = 4
# TODO(synk): dropout between LSTM layers is a training-only op in PyTorch; eval forward
#             (implemented here) treats it as identity.


def _lstm_fc_kernel(x_ref,        # (T*BP, D)    float32, time-major flattened, batch-padded
                    w_ih_t_ref,   # (L, D, 4H)   float32 (transposed PyTorch weight_ih)
                    w_hh_t_ref,   # (L, H, 4H)   float32 (transposed PyTorch weight_hh)
                    b_ref,        # (L, 1, 4H)   float32 (b_ih + b_hh, pre-summed)
                    fc_w_t_ref,   # (H, CP)      float32 (transposed, lane-padded fc weight)
                    fc_b_ref,     # (BP, CP)     float32 (pre-broadcast, lane-padded fc bias)
                    out_ref):     # (BP, CP)     float32
    TBP, _ = x_ref.shape
    L = w_ih_t_ref.shape[0]
    H = w_hh_t_ref.shape[1]
    BP = out_ref.shape[0]
    T = TBP // BP

    # Hoisted, batched input projection for layer 0 — off the recurrence path.
    pre0 = (jnp.dot(x_ref[...], w_ih_t_ref[0],
                    preferred_element_type=jnp.float32)
            + b_ref[0])                                            # (T*BP, 4H)

    # Loop-invariant weight loads, hoisted out of the wavefront loop.
    w_hh = [w_hh_t_ref[l] for l in range(L)]                       # each (H, 4H)
    w_ih_up = [w_ih_t_ref[l] for l in range(1, L)]                 # each (H, 4H)
    b_up = [b_ref[l] for l in range(1, L)]                         # each (1, 4H)

    h = [jnp.zeros((BP, H), jnp.float32) for _ in range(L)]
    c = [jnp.zeros((BP, H), jnp.float32) for _ in range(L)]

    def lstm_step(gates, c_prev):
        # Two full-width EUP passes instead of four narrow ones.
        sig = jax.nn.sigmoid(gates)                                # (BP, 4H)
        th = jnp.tanh(gates)                                       # (BP, 4H)
        i_g = sig[:, 0 * H:1 * H]
        f_g = sig[:, 1 * H:2 * H]
        o_g = sig[:, 3 * H:4 * H]
        g_g = th[:, 2 * H:3 * H]
        c_new = f_g * c_prev + i_g * g_g
        h_new = o_g * jnp.tanh(c_new)
        return h_new, c_new

    # Software wavefront over (layer, time): wave s processes (l, t = s - l) for every
    # valid t.  Layers are visited top-down so h[l-1] still holds wave (s-1)'s value
    # (i.e. time t) when layer l consumes it; within a wave all layer steps are
    # independent, overlapping their MXU/EUP latencies.
    for s in range(T + L - 1):
        for l in range(L - 1, -1, -1):
            t = s - l
            if t < 0 or t >= T:
                continue
            if l == 0:
                gates = pre0[t * BP:(t + 1) * BP, :] + jnp.dot(
                    h[0], w_hh[0], preferred_element_type=jnp.float32)   # (BP, 4H)
            else:
                gates = (jnp.dot(h[l - 1], w_ih_up[l - 1],
                                 preferred_element_type=jnp.float32)
                         + jnp.dot(h[l], w_hh[l],
                                   preferred_element_type=jnp.float32)
                         + b_up[l - 1])                                  # (BP, 4H)
            h[l], c[l] = lstm_step(gates, c[l])

    # h[L-1] is the last timestep of the top layer == output_seq[-1].
    out_ref[...] = (jnp.dot(h[L - 1], fc_w_t_ref[...],
                            preferred_element_type=jnp.float32)
                    + fc_b_ref[...])                               # (BP, CP)


def rnn_module_forward(x_btd, params):
    """x_btd: (batch, num_frames, img_feature_dim) float32. Returns (batch, num_class)."""
    B, T, D = x_btd.shape
    L, fourH, Din = params["w_ih"].shape
    H = fourH // 4
    C = params["fc_w"].shape[0]
    assert Din == D, "w_ih input dim must match img_feature_dim"
    assert L == 1 or D == H, (
        "stacked (L, 4H, D) w_ih layout assumes img_feature_dim == hidden_size")

    # Pad batch to one full sublane group and the fc output to one full lane group so
    # every per-timestep tile in the kernel is (8, 128)-aligned (no XLU shuffles or
    # masked stores on the recurrence path).  Padded rows/cols are sliced off below.
    BP = ((max(B, 8) + 7) // 8) * 8
    CP = ((max(C, 128) + 127) // 128) * 128

    # Glue: permute(1, 0, 2) like the PyTorch module, flatten time-major, and
    # pre-transpose / pre-pad / pre-broadcast weights so the kernel's hot path is pure
    # MXU matmuls + VPU/EUP gate math.
    x_tbd = jnp.transpose(x_btd, (1, 0, 2)).astype(jnp.float32)      # (T, B, D)
    x_pad = jnp.pad(x_tbd, ((0, 0), (0, BP - B), (0, 0)))            # (T, BP, D)
    x_flat = x_pad.reshape(T * BP, D)                                # (T*BP, D)
    w_ih_t = jnp.transpose(params["w_ih"], (0, 2, 1))                # (L, D, 4H)
    w_hh_t = jnp.transpose(params["w_hh"], (0, 2, 1))                # (L, H, 4H)
    b_sum = (params["b_ih"] + params["b_hh"])[:, None, :]            # (L, 1, 4H)
    fc_w_t = jnp.pad(jnp.transpose(params["fc_w"], (1, 0)),
                     ((0, 0), (0, CP - C)))                          # (H, CP)
    fc_b_p = jnp.pad(params["fc_b"], (0, CP - C))                    # (CP,)
    fc_b_b = jnp.broadcast_to(fc_b_p[None, :], (BP, CP))             # (BP, CP)

    vmem = pl.BlockSpec(memory_space=pltpu.MemorySpace.VMEM)
    out_pad = pl.pallas_call(
        _lstm_fc_kernel,
        out_shape=jax.ShapeDtypeStruct((BP, CP), jnp.float32),
        in_specs=[vmem] * 6,
        out_specs=vmem,
    )(x_flat, w_ih_t, w_hh_t, b_sum, fc_w_t, fc_b_b)
    return out_pad[:B, :C]


def _init_params(key):
    """Deterministic PyTorch-style init: uniform(-1/sqrt(H), 1/sqrt(H))."""
    H, D, L, C = HIDDEN_SIZE, IMG_FEATURE_DIM, NUM_LAYERS, NUM_CLASS
    bound = 1.0 / (H ** 0.5)
    ks = jax.random.split(key, 6)
    u = lambda k, shape: jax.random.uniform(k, shape, jnp.float32, -bound, bound)
    return {
        "w_ih": u(ks[0], (L, 4 * H, D)),   # layer 0 uses D == H, so stacking is exact
        "w_hh": u(ks[1], (L, 4 * H, H)),
        "b_ih": u(ks[2], (L, 4 * H)),
        "b_hh": u(ks[3], (L, 4 * H)),
        "fc_w": u(ks[4], (C, H)),
        "fc_b": u(ks[5], (C,)),
    }


def _reference(x_btd, params):
    """Pure-JAX reference of the same forward pass (for validation)."""
    x = jnp.transpose(x_btd, (1, 0, 2))
    T, B, _ = x.shape
    H = HIDDEN_SIZE
    layer_in = x
    for l in range(NUM_LAYERS):
        h = jnp.zeros((B, H), jnp.float32)
        c = jnp.zeros((B, H), jnp.float32)
        outs = []
        for t in range(T):
            g = (layer_in[t] @ params["w_ih"][l].T + params["b_ih"][l]
                 + h @ params["w_hh"][l].T + params["b_hh"][l])
            i_g = jax.nn.sigmoid(g[:, 0 * H:1 * H])
            f_g = jax.nn.sigmoid(g[:, 1 * H:2 * H])
            g_g = jnp.tanh(g[:, 2 * H:3 * H])
            o_g = jax.nn.sigmoid(g[:, 3 * H:4 * H])
            c = f_g * c + i_g * g_g
            h = o_g * jnp.tanh(c)
            outs.append(h)
        layer_in = jnp.stack(outs)
    return layer_in[-1] @ params["fc_w"].T + params["fc_b"]


if __name__ == "__main__":
    key = jax.random.PRNGKey(0)
    kx, kp = jax.random.split(key)
    x = jax.random.normal(kx, (BATCH, NUM_FRAMES, IMG_FEATURE_DIM), jnp.float32)
    params = _init_params(kp)

    out = rnn_module_forward(x, params)
    out = jax.block_until_ready(out)

    ref = _reference(x, params)
    assert out.shape == (BATCH, NUM_CLASS)
    assert jnp.allclose(out, ref, atol=1e-4, rtol=1e-4), "mismatch vs pure-JAX reference"

    print("KERNEL_OK")
</pallas_src>

<mosaic_0001>
module attributes {stable_mosaic.version = 11 : i64} {
  func.func @_lstm_fc_kernel(%arg0: memref<64x32xf32, #tpu.memory_space<vmem>>, %arg1: memref<2x32x128xf32, #tpu.memory_space<vmem>>, %arg2: memref<2x32x128xf32, #tpu.memory_space<vmem>>, %arg3: memref<2x1x128xf32, #tpu.memory_space<vmem>>, %arg4: memref<32x128xf32, #tpu.memory_space<vmem>>, %arg5: memref<8x128xf32, #tpu.memory_space<vmem>>, %arg6: memref<8x128xf32, #tpu.memory_space<vmem>>) attributes {dimension_semantics = [], scalar_prefetch = 0 : i64, scratch_operands = 0 : i64, tpu.core_type = #tpu.core_type<tc>} {
    %c0 = arith.constant 0 : index
    %c0_0 = arith.constant 0 : index
    %0 = vector.load %arg0[%c0, %c0_0] : memref<64x32xf32, #tpu.memory_space<vmem>>, vector<64x32xf32>
    %c0_1 = arith.constant 0 : index
    %c0_2 = arith.constant 0 : index
    %c0_3 = arith.constant 0 : index
    %1 = vector.load %arg1[%c0_1, %c0_2, %c0_3] : memref<2x32x128xf32, #tpu.memory_space<vmem>>, vector<1x32x128xf32>
    %2 = vector.shape_cast %1 : vector<1x32x128xf32> to vector<32x128xf32>
    %cst = arith.constant dense<0.000000e+00> : vector<64x128xf32>
    %3 = tpu.matmul %0, %2, %cst {dimension_numbers = #tpu.dot_dimension_numbers<[1], [0], [0], [1], [0, 0, 1, 1], [], []>} : vector<64x32xf32>, vector<32x128xf32>, vector<64x128xf32> -> vector<64x128xf32>
    %c0_4 = arith.constant 0 : index
    %c0_5 = arith.constant 0 : index
    %c0_6 = arith.constant 0 : index
    %4 = vector.load %arg3[%c0_4, %c0_5, %c0_6] : memref<2x1x128xf32, #tpu.memory_space<vmem>>, vector<1x1x128xf32>
    %5 = vector.shape_cast %4 : vector<1x1x128xf32> to vector<1x128xf32>
    %6 = vector.broadcast %5 : vector<1x128xf32> to vector<64x128xf32>
    %7 = arith.addf %3, %6 : vector<64x128xf32>
    %c0_7 = arith.constant 0 : index
    %c0_8 = arith.constant 0 : index
    %c0_9 = arith.constant 0 : index
    %8 = vector.load %arg2[%c0_7, %c0_8, %c0_9] : memref<2x32x128xf32, #tpu.memory_space<vmem>>, vector<1x32x128xf32>
    %9 = vector.shape_cast %8 : vector<1x32x128xf32> to vector<32x128xf32>
    %c1 = arith.constant 1 : index
    %c0_10 = arith.constant 0 : index
    %c0_11 = arith.constant 0 : index
    %10 = vector.load %arg2[%c1, %c0_10, %c0_11] : memref<2x32x128xf32, #tpu.memory_space<vmem>>, vector<1x32x128xf32>
    %11 = vector.shape_cast %10 : vector<1x32x128xf32> to vector<32x128xf32>
    %c1_12 = arith.constant 1 : index
    %c0_13 = arith.constant 0 : index
    %c0_14 = arith.constant 0 : index
    %12 = vector.load %arg1[%c1_12, %c0_13, %c0_14] : memref<2x32x128xf32, #tpu.memory_space<vmem>>, vector<1x32x128xf32>
    %13 = vector.shape_cast %12 : vector<1x32x128xf32> to vector<32x128xf32>
    %c1_15 = arith.constant 1 : index
    %c0_16 = arith.constant 0 : index
    %c0_17 = arith.constant 0 : index
    %14 = vector.load %arg3[%c1_15, %c0_16, %c0_17] : memref<2x1x128xf32, #tpu.memory_space<vmem>>, vector<1x1x128xf32>
    %15 = vector.shape_cast %14 : vector<1x1x128xf32> to vector<1x128xf32>
    %cst_18 = arith.constant 0.000000e+00 : f32
    %16 = vector.broadcast %cst_18 : f32 to vector<8x32xf32>
    %cst_19 = arith.constant 0.000000e+00 : f32
    %17 = vector.broadcast %cst_19 : f32 to vector<8x32xf32>
    %cst_20 = arith.constant 0.000000e+00 : f32
    %18 = vector.broadcast %cst_20 : f32 to vector<8x32xf32>
    %cst_21 = arith.constant 0.000000e+00 : f32
    %19 = vector.broadcast %cst_21 : f32 to vector<8x32xf32>
    %20 = vector.extract_strided_slice %7 {offsets = [0, 0], sizes = [8, 128], strides = [1, 1]} : vector<64x128xf32> to vector<8x128xf32>
    %cst_22 = arith.constant dense<0.000000e+00> : vector<8x128xf32>
    %21 = tpu.matmul %16, %9, %cst_22 {dimension_numbers = #tpu.dot_dimension_numbers<[1], [0], [0], [1], [0, 0, 1, 1], [], []>} : vector<8x32xf32>, vector<32x128xf32>, vector<8x128xf32> -> vector<8x128xf32>
    %22 = arith.addf %20, %21 : vector<8x128xf32>
    %23 = arith.negf %22 : vector<8x128xf32>
    %24 = math.exp %23 : vector<8x128xf32>
    %cst_23 = arith.constant 1.000000e+00 : f32
    %25 = vector.broadcast %cst_23 : f32 to vector<8x128xf32>
    %26 = arith.addf %25, %24 : vector<8x128xf32>
    %27 = arith.divf %25, %26 : vector<8x128xf32>
    %28 = math.tanh %22 : vector<8x128xf32>
    %29 = vector.extract_strided_slice %27 {offsets = [0, 0], sizes = [8, 32], strides = [1, 1]} : vector<8x128xf32> to vector<8x32xf32>
    %30 = vector.extract_strided_slice %27 {offsets = [0, 32], sizes = [8, 32], strides = [1, 1]} : vector<8x128xf32> to vector<8x32xf32>
    %31 = vector.extract_strided_slice %27 {offsets = [0, 96], sizes = [8, 32], strides = [1, 1]} : vector<8x128xf32> to vector<8x32xf32>
    %32 = vector.extract_strided_slice %28 {offsets = [0, 64], sizes = [8, 32], strides = [1, 1]} : vector<8x128xf32> to vector<8x32xf32>
    %33 = arith.mulf %30, %18 : vector<8x32xf32>
    %34 = arith.mulf %29, %32 : vector<8x32xf32>
    %35 = arith.addf %33, %34 : vector<8x32xf32>
    %36 = math.tanh %35 : vector<8x32xf32>
    %37 = arith.mulf %31, %36 : vector<8x32xf32>
    %cst_24 = arith.constant dense<0.000000e+00> : vector<8x128xf32>
    %38 = tpu.matmul %37, %13, %cst_24 {dimension_numbers = #tpu.dot_dimension_numbers<[1], [0], [0], [1], [0, 0, 1, 1], [], []>} : vector<8x32xf32>, vector<32x128xf32>, vector<8x128xf32> -> vector<8x128xf32>
    %cst_25 = arith.constant dense<0.000000e+00> : vector<8x128xf32>
    %39 = tpu.matmul %17, %11, %cst_25 {dimension_numbers = #tpu.dot_dimension_numbers<[1], [0], [0], [1], [0, 0, 1, 1], [], []>} : vector<8x32xf32>, vector<32x128xf32>, vector<8x128xf32> -> vector<8x128xf32>
    %40 = arith.addf %38, %39 : vector<8x128xf32>
    %41 = vector.broadcast %15 : vector<1x128xf32> to vector<8x128xf32>
    %42 = arith.addf %40, %41 : vector<8x128xf32>
    %43 = arith.negf %42 : vector<8x128xf32>
    %44 = math.exp %43 : vector<8x128xf32>
    %cst_26 = arith.constant 1.000000e+00 : f32
    %45 = vector.broadcast %cst_26 : f32 to vector<8x128xf32>
    %46 = arith.addf %45, %44 : vector<8x128xf32>
    %47 = arith.divf %45, %46 : vector<8x128xf32>
    %48 = math.tanh %42 : vector<8x128xf32>
    %49 = vector.extract_strided_slice %47 {offsets = [0, 0], sizes = [8, 32], strides = [1, 1]} : vector<8x128xf32> to vector<8x32xf32>
    %50 = vector.extract_strided_slice %47 {offsets = [0, 32], sizes = [8, 32], strides = [1, 1]} : vector<8x128xf32> to vector<8x32xf32>
    %51 = vector.extract_strided_slice %47 {offsets = [0, 96], sizes = [8, 32], strides = [1, 1]} : vector<8x128xf32> to vector<8x32xf32>
    %52 = vector.extract_strided_slice %48 {offsets = [0, 64], sizes = [8, 32], strides = [1, 1]} : vector<8x128xf32> to vector<8x32xf32>
    %53 = arith.mulf %50, %19 : vector<8x32xf32>
    %54 = arith.mulf %49, %52 : vector<8x32xf32>
    %55 = arith.addf %53, %54 : vector<8x32xf32>
    %56 = math.tanh %55 : vector<8x32xf32>
    %57 = arith.mulf %51, %56 : vector<8x32xf32>
    %58 = vector.extract_strided_slice %7 {offsets = [8, 0], sizes = [8, 128], strides = [1, 1]} : vector<64x128xf32> to vector<8x128xf32>
    %cst_27 = arith.constant dense<0.000000e+00> : vector<8x128xf32>
    %59 = tpu.matmul %37, %9, %cst_27 {dimension_numbers = #tpu.dot_dimension_numbers<[1], [0], [0], [1], [0, 0, 1, 1], [], []>} : vector<8x32xf32>, vector<32x128xf32>, vector<8x128xf32> -> vector<8x128xf32>
    %60 = arith.addf %58, %59 : vector<8x128xf32>
    %61 = arith.negf %60 : vector<8x128xf32>
    %62 = math.exp %61 : vector<8x128xf32>
    %cst_28 = arith.constant 1.000000e+00 : f32
    %63 = vector.broadcast %cst_28 : f32 to vector<8x128xf32>
    %64 = arith.addf %63, %62 : vector<8x128xf32>
    %65 = arith.divf %63, %64 : vector<8x128xf32>
    %66 = math.tanh %60 : vector<8x128xf32>
    %67 = vector.extract_strided_slice %65 {offsets = [0, 0], sizes = [8, 32], strides = [1, 1]} : vector<8x128xf32> to vector<8x32xf32>
    %68 = vector.extract_strided_slice %65 {offsets = [0, 32], sizes = [8, 32], strides = [1, 1]} : vector<8x128xf32> to vector<8x32xf32>
    %69 = vector.extract_strided_slice %65 {offsets = [0, 96], sizes = [8, 32], strides = [1, 1]} : vector<8x128xf32> to vector<8x32xf32>
    %70 = vector.extract_strided_slice %66 {offsets = [0, 64], sizes = [8, 32], strides = [1, 1]} : vector<8x128xf32> to vector<8x32xf32>
    %71 = arith.mulf %68, %35 : vector<8x32xf32>
    %72 = arith.mulf %67, %70 : vector<8x32xf32>
    %73 = arith.addf %71, %72 : vector<8x32xf32>
    %74 = math.tanh %73 : vector<8x32xf32>
    %75 = arith.mulf %69, %74 : vector<8x32xf32>
    %cst_29 = arith.constant dense<0.000000e+00> : vector<8x128xf32>
    %76 = tpu.matmul %75, %13, %cst_29 {dimension_numbers = #tpu.dot_dimension_numbers<[1], [0], [0], [1], [0, 0, 1, 1], [], []>} : vector<8x32xf32>, vector<32x128xf32>, vector<8x128xf32> -> vector<8x128xf32>
    %cst_30 = arith.constant dense<0.000000e+00> : vector<8x128xf32>
    %77 = tpu.matmul %57, %11, %cst_30 {dimension_numbers = #tpu.dot_dimension_numbers<[1], [0], [0], [1], [0, 0, 1, 1], [], []>} : vector<8x32xf32>, vector<32x128xf32>, vector<8x128xf32> -> vector<8x128xf32>
    %78 = arith.addf %76, %77 : vector<8x128xf32>
    %79 = vector.broadcast %15 : vector<1x128xf32> to vector<8x128xf32>
    %80 = arith.addf %78, %79 : vector<8x128xf32>
    %81 = arith.negf %80 : vector<8x128xf32>
    %82 = math.exp %81 : vector<8x128xf32>
    %cst_31 = arith.constant 1.000000e+00 : f32
    %83 = vector.broadcast %cst_31 : f32 to vector<8x128xf32>
    %84 = arith.addf %83, %82 : vector<8x128xf32>
    %85 = arith.divf %83, %84 : vector<8x128xf32>
    %86 = math.tanh %80 : vector<8x128xf32>
    %87 = vector.extract_strided_slice %85 {offsets = [0, 0], sizes = [8, 32], strides = [1, 1]} : vector<8x128xf32> to vector<8x32xf32>
    %88 = vector.extract_strided_slice %85 {offsets = [0, 32], sizes = [8, 32], strides = [1, 1]} : vector<8x128xf32> to vector<8x32xf32>
    %89 = vector.extract_strided_slice %85 {offsets = [0, 96], sizes = [8, 32], strides = [1, 1]} : vector<8x128xf32> to vector<8x32xf32>
    %90 = vector.extract_strided_slice %86 {offsets = [0, 64], sizes = [8, 32], strides = [1, 1]} : vector<8x128xf32> to vector<8x32xf32>
    %91 = arith.mulf %88, %55 : vector<8x32xf32>
    %92 = arith.mulf %87, %90 : vector<8x32xf32>
    %93 = arith.addf %91, %92 : vector<8x32xf32>
    %94 = math.tanh %93 : vector<8x32xf32>
    %95 = arith.mulf %89, %94 : vector<8x32xf32>
    %96 = vector.extract_strided_slice %7 {offsets = [16, 0], sizes = [8, 128], strides = [1, 1]} : vector<64x128xf32> to vector<8x128xf32>
    %cst_32 = arith.constant dense<0.000000e+00> : vector<8x128xf32>
    %97 = tpu.matmul %75, %9, %cst_32 {dimension_numbers = #tpu.dot_dimension_numbers<[1], [0], [0], [1], [0, 0, 1, 1], [], []>} : vector<8x32xf32>, vector<32x128xf32>, vector<8x128xf32> -> vector<8x128xf32>
    %98 = arith.addf %96, %97 : vector<8x128xf32>
    %99 = arith.negf %98 : vector<8x128xf32>
    %100 = math.exp %99 : vector<8x128xf32>
    %cst_33 = arith.constant 1.000000e+00 : f32
    %101 = vector.broadcast %cst_33 : f32 to vector<8x128xf32>
    %102 = arith.addf %101, %100 : vector<8x128xf32>
    %103 = arith.divf %101, %102 : vector<8x128xf32>
    %104 = math.tanh %98 : vector<8x128xf32>
    %105 = vector.extract_strided_slice %103 {offsets = [0, 0], sizes = [8, 32], strides = [1, 1]} : vector<8x128xf32> to vector<8x32xf32>
    %106 = vector.extract_strided_slice %103 {offsets = [0, 32], sizes = [8, 32], strides = [1, 1]} : vector<8x128xf32> to vector<8x32xf32>
    %107 = vector.extract_strided_slice %103 {offsets = [0, 96], sizes = [8, 32], strides = [1, 1]} : vector<8x128xf32> to vector<8x32xf32>
    %108 = vector.extract_strided_slice %104 {offsets = [0, 64], sizes = [8, 32], strides = [1, 1]} : vector<8x128xf32> to vector<8x32xf32>
    %109 = arith.mulf %106, %73 : vector<8x32xf32>
    %110 = arith.mulf %105, %108 : vector<8x32xf32>
    %111 = arith.addf %109, %110 : vector<8x32xf32>
    %112 = math.tanh %111 : vector<8x32xf32>
    %113 = arith.mulf %107, %112 : vector<8x32xf32>
    %cst_34 = arith.constant dense<0.000000e+00> : vector<8x128xf32>
    %114 = tpu.matmul %113, %13, %cst_34 {dimension_numbers = #tpu.dot_dimension_numbers<[1], [0], [0], [1], [0, 0, 1, 1], [], []>} : vector<8x32xf32>, vector<32x128xf32>, vector<8x128xf32> -> vector<8x128xf32>
    %cst_35 = arith.constant dense<0.000000e+00> : vector<8x128xf32>
    %115 = tpu.matmul %95, %11, %cst_35 {dimension_numbers = #tpu.dot_dimension_numbers<[1], [0], [0], [1], [0, 0, 1, 1], [], []>} : vector<8x32xf32>, vector<32x128xf32>, vector<8x128xf32> -> vector<8x128xf32>
    %116 = arith.addf %114, %115 : vector<8x128xf32>
    %117 = vector.broadcast %15 : vector<1x128xf32> to vector<8x128xf32>
    %118 = arith.addf %116, %117 : vector<8x128xf32>
    %119 = arith.negf %118 : vector<8x128xf32>
    %120 = math.exp %119 : vector<8x128xf32>
    %cst_36 = arith.constant 1.000000e+00 : f32
    %121 = vector.broadcast %cst_36 : f32 to vector<8x128xf32>
    %122 = arith.addf %121, %120 : vector<8x128xf32>
    %123 = arith.divf %121, %122 : vector<8x128xf32>
    %124 = math.tanh %118 : vector<8x128xf32>
    %125 = vector.extract_strided_slice %123 {offsets = [0, 0], sizes = [8, 32], strides = [1, 1]} : vector<8x128xf32> to vector<8x32xf32>
    %126 = vector.extract_strided_slice %123 {offsets = [0, 32], sizes = [8, 32], strides = [1, 1]} : vector<8x128xf32> to vector<8x32xf32>
    %127 = vector.extract_strided_slice %123 {offsets = [0, 96], sizes = [8, 32], strides = [1, 1]} : vector<8x128xf32> to vector<8x32xf32>
    %128 = vector.extract_strided_slice %124 {offsets = [0, 64], sizes = [8, 32], strides = [1, 1]} : vector<8x128xf32> to vector<8x32xf32>
    %129 = arith.mulf %126, %93 : vector<8x32xf32>
    %130 = arith.mulf %125, %128 : vector<8x32xf32>
    %131 = arith.addf %129, %130 : vector<8x32xf32>
    %132 = math.tanh %131 : vector<8x32xf32>
    %133 = arith.mulf %127, %132 : vector<8x32xf32>
    %134 = vector.extract_strided_slice %7 {offsets = [24, 0], sizes = [8, 128], strides = [1, 1]} : vector<64x128xf32> to vector<8x128xf32>
    %cst_37 = arith.constant dense<0.000000e+00> : vector<8x128xf32>
    %135 = tpu.matmul %113, %9, %cst_37 {dimension_numbers = #tpu.dot_dimension_numbers<[1], [0], [0], [1], [0, 0, 1, 1], [], []>} : vector<8x32xf32>, vector<32x128xf32>, vector<8x128xf32> -> vector<8x128xf32>
    %136 = arith.addf %134, %135 : vector<8x128xf32>
    %137 = arith.negf %136 : vector<8x128xf32>
    %138 = math.exp %137 : vector<8x128xf32>
    %cst_38 = arith.constant 1.000000e+00 : f32
    %139 = vector.broadcast %cst_38 : f32 to vector<8x128xf32>
    %140 = arith.addf %139, %138 : vector<8x128xf32>
    %141 = arith.divf %139, %140 : vector<8x128xf32>
    %142 = math.tanh %136 : vector<8x128xf32>
    %143 = vector.extract_strided_slice %141 {offsets = [0, 0], sizes = [8, 32], strides = [1, 1]} : vector<8x128xf32> to vector<8x32xf32>
    %144 = vector.extract_strided_slice %141 {offsets = [0, 32], sizes = [8, 32], strides = [1, 1]} : vector<8x128xf32> to vector<8x32xf32>
    %145 = vector.extract_strided_slice %141 {offsets = [0, 96], sizes = [8, 32], strides = [1, 1]} : vector<8x128xf32> to vector<8x32xf32>
    %146 = vector.extract_strided_slice %142 {offsets = [0, 64], sizes = [8, 32], strides = [1, 1]} : vector<8x128xf32> to vector<8x32xf32>
    %147 = arith.mulf %144, %111 : vector<8x32xf32>
    %148 = arith.mulf %143, %146 : vector<8x32xf32>
    %149 = arith.addf %147, %148 : vector<8x32xf32>
    %150 = math.tanh %149 : vector<8x32xf32>
    %151 = arith.mulf %145, %150 : vector<8x32xf32>
    %cst_39 = arith.constant dense<0.000000e+00> : vector<8x128xf32>
    %152 = tpu.matmul %151, %13, %cst_39 {dimension_numbers = #tpu.dot_dimension_numbers<[1], [0], [0], [1], [0, 0, 1, 1], [], []>} : vector<8x32xf32>, vector<32x128xf32>, vector<8x128xf32> -> vector<8x128xf32>
    %cst_40 = arith.constant dense<0.000000e+00> : vector<8x128xf32>
    %153 = tpu.matmul %133, %11, %cst_40 {dimension_numbers = #tpu.dot_dimension_numbers<[1], [0], [0], [1], [0, 0, 1, 1], [], []>} : vector<8x32xf32>, vector<32x128xf32>, vector<8x128xf32> -> vector<8x128xf32>
    %154 = arith.addf %152, %153 : vector<8x128xf32>
    %155 = vector.broadcast %15 : vector<1x128xf32> to vector<8x128xf32>
    %156 = arith.addf %154, %155 : vector<8x128xf32>
    %157 = arith.negf %156 : vector<8x128xf32>
    %158 = math.exp %157 : vector<8x128xf32>
    %cst_41 = arith.constant 1.000000e+00 : f32
    %159 = vector.broadcast %cst_41 : f32 to vector<8x128xf32>
    %160 = arith.addf %159, %158 : vector<8x128xf32>
    %161 = arith.divf %159, %160 : vector<8x128xf32>
    %162 = math.tanh %156 : vector<8x128xf32>
    %163 = vector.extract_strided_slice %161 {offsets = [0, 0], sizes = [8, 32], strides = [1, 1]} : vector<8x128xf32> to vector<8x32xf32>
    %164 = vector.extract_strided_slice %161 {offsets = [0, 32], sizes = [8, 32], strides = [1, 1]} : vector<8x128xf32> to vector<8x32xf32>
    %165 = vector.extract_strided_slice %161 {offsets = [0, 96], sizes = [8, 32], strides = [1, 1]} : vector<8x128xf32> to vector<8x32xf32>
    %166 = vector.extract_strided_slice %162 {offsets = [0, 64], sizes = [8, 32], strides = [1, 1]} : vector<8x128xf32> to vector<8x32xf32>
    %167 = arith.mulf %164, %131 : vector<8x32xf32>
    %168 = arith.mulf %163, %166 : vector<8x32xf32>
    %169 = arith.addf %167, %168 : vector<8x32xf32>
    %170 = math.tanh %169 : vector<8x32xf32>
    %171 = arith.mulf %165, %170 : vector<8x32xf32>
    %172 = vector.extract_strided_slice %7 {offsets = [32, 0], sizes = [8, 128], strides = [1, 1]} : vector<64x128xf32> to vector<8x128xf32>
    %cst_42 = arith.constant dense<0.000000e+00> : vector<8x128xf32>
    %173 = tpu.matmul %151, %9, %cst_42 {dimension_numbers = #tpu.dot_dimension_numbers<[1], [0], [0], [1], [0, 0, 1, 1], [], []>} : vector<8x32xf32>, vector<32x128xf32>, vector<8x128xf32> -> vector<8x128xf32>
    %174 = arith.addf %172, %173 : vector<8x128xf32>
    %175 = arith.negf %174 : vector<8x128xf32>
    %176 = math.exp %175 : vector<8x128xf32>
    %cst_43 = arith.constant 1.000000e+00 : f32
    %177 = vector.broadcast %cst_43 : f32 to vector<8x128xf32>
    %178 = arith.addf %177, %176 : vector<8x128xf32>
    %179 = arith.divf %177, %178 : vector<8x128xf32>
    %180 = math.tanh %174 : vector<8x128xf32>
    %181 = vector.extract_strided_slice %179 {offsets = [0, 0], sizes = [8, 32], strides = [1, 1]} : vector<8x128xf32> to vector<8x32xf32>
    %182 = vector.extract_strided_slice %179 {offsets = [0, 32], sizes = [8, 32], strides = [1, 1]} : vector<8x128xf32> to vector<8x32xf32>
    %183 = vector.extract_strided_slice %179 {offsets = [0, 96], sizes = [8, 32], strides = [1, 1]} : vector<8x128xf32> to vector<8x32xf32>
    %184 = vector.extract_strided_slice %180 {offsets = [0, 64], sizes = [8, 32], strides = [1, 1]} : vector<8x128xf32> to vector<8x32xf32>
    %185 = arith.mulf %182, %149 : vector<8x32xf32>
    %186 = arith.mulf %181, %184 : vector<8x32xf32>
    %187 = arith.addf %185, %186 : vector<8x32xf32>
    %188 = math.tanh %187 : vector<8x32xf32>
    %189 = arith.mulf %183, %188 : vector<8x32xf32>
    %cst_44 = arith.constant dense<0.000000e+00> : vector<8x128xf32>
    %190 = tpu.matmul %189, %13, %cst_44 {dimension_numbers = #tpu.dot_dimension_numbers<[1], [0], [0], [1], [0, 0, 1, 1], [], []>} : vector<8x32xf32>, vector<32x128xf32>, vector<8x128xf32> -> vector<8x128xf32>
    %cst_45 = arith.constant dense<0.000000e+00> : vector<8x128xf32>
    %191 = tpu.matmul %171, %11, %cst_45 {dimension_numbers = #tpu.dot_dimension_numbers<[1], [0], [0], [1], [0, 0, 1, 1], [], []>} : vector<8x32xf32>, vector<32x128xf32>, vector<8x128xf32> -> vector<8x128xf32>
    %192 = arith.addf %190, %191 : vector<8x128xf32>
    %193 = vector.broadcast %15 : vector<1x128xf32> to vector<8x128xf32>
    %194 = arith.addf %192, %193 : vector<8x128xf32>
    %195 = arith.negf %194 : vector<8x128xf32>
    %196 = math.exp %195 : vector<8x128xf32>
    %cst_46 = arith.constant 1.000000e+00 : f32
    %197 = vector.broadcast %cst_46 : f32 to vector<8x128xf32>
    %198 = arith.addf %197, %196 : vector<8x128xf32>
    %199 = arith.divf %197, %198 : vector<8x128xf32>
    %200 = math.tanh %194 : vector<8x128xf32>
    %201 = vector.extract_strided_slice %199 {offsets = [0, 0], sizes = [8, 32], strides = [1, 1]} : vector<8x128xf32> to vector<8x32xf32>
    %202 = vector.extract_strided_slice %199 {offsets = [0, 32], sizes = [8, 32], strides = [1, 1]} : vector<8x128xf32> to vector<8x32xf32>
    %203 = vector.extract_strided_slice %199 {offsets = [0, 96], sizes = [8, 32], strides = [1, 1]} : vector<8x128xf32> to vector<8x32xf32>
    %204 = vector.extract_strided_slice %200 {offsets = [0, 64], sizes = [8, 32], strides = [1, 1]} : vector<8x128xf32> to vector<8x32xf32>
    %205 = arith.mulf %202, %169 : vector<8x32xf32>
    %206 = arith.mulf %201, %204 : vector<8x32xf32>
    %207 = arith.addf %205, %206 : vector<8x32xf32>
    %208 = math.tanh %207 : vector<8x32xf32>
    %209 = arith.mulf %203, %208 : vector<8x32xf32>
    %210 = vector.extract_strided_slice %7 {offsets = [40, 0], sizes = [8, 128], strides = [1, 1]} : vector<64x128xf32> to vector<8x128xf32>
    %cst_47 = arith.constant dense<0.000000e+00> : vector<8x128xf32>
    %211 = tpu.matmul %189, %9, %cst_47 {dimension_numbers = #tpu.dot_dimension_numbers<[1], [0], [0], [1], [0, 0, 1, 1], [], []>} : vector<8x32xf32>, vector<32x128xf32>, vector<8x128xf32> -> vector<8x128xf32>
    %212 = arith.addf %210, %211 : vector<8x128xf32>
    %213 = arith.negf %212 : vector<8x128xf32>
    %214 = math.exp %213 : vector<8x128xf32>
    %cst_48 = arith.constant 1.000000e+00 : f32
    %215 = vector.broadcast %cst_48 : f32 to vector<8x128xf32>
    %216 = arith.addf %215, %214 : vector<8x128xf32>
    %217 = arith.divf %215, %216 : vector<8x128xf32>
    %218 = math.tanh %212 : vector<8x128xf32>
    %219 = vector.extract_strided_slice %217 {offsets = [0, 0], sizes = [8, 32], strides = [1, 1]} : vector<8x128xf32> to vector<8x32xf32>
    %220 = vector.extract_strided_slice %217 {offsets = [0, 32], sizes = [8, 32], strides = [1, 1]} : vector<8x128xf32> to vector<8x32xf32>
    %221 = vector.extract_strided_slice %217 {offsets = [0, 96], sizes = [8, 32], strides = [1, 1]} : vector<8x128xf32> to vector<8x32xf32>
    %222 = vector.extract_strided_slice %218 {offsets = [0, 64], sizes = [8, 32], strides = [1, 1]} : vector<8x128xf32> to vector<8x32xf32>
    %223 = arith.mulf %220, %187 : vector<8x32xf32>
    %224 = arith.mulf %219, %222 : vector<8x32xf32>
    %225 = arith.addf %223, %224 : vector<8x32xf32>
    %226 = math.tanh %225 : vector<8x32xf32>
    %227 = arith.mulf %221, %226 : vector<8x32xf32>
    %cst_49 = arith.constant dense<0.000000e+00> : vector<8x128xf32>
    %228 = tpu.matmul %227, %13, %cst_49 {dimension_numbers = #tpu.dot_dimension_numbers<[1], [0], [0], [1], [0, 0, 1, 1], [], []>} : vector<8x32xf32>, vector<32x128xf32>, vector<8x128xf32> -> vector<8x128xf32>
    %cst_50 = arith.constant dense<0.000000e+00> : vector<8x128xf32>
    %229 = tpu.matmul %209, %11, %cst_50 {dimension_numbers = #tpu.dot_dimension_numbers<[1], [0], [0], [1], [0, 0, 1, 1], [], []>} : vector<8x32xf32>, vector<32x128xf32>, vector<8x128xf32> -> vector<8x128xf32>
    %230 = arith.addf %228, %229 : vector<8x128xf32>
    %231 = vector.broadcast %15 : vector<1x128xf32> to vector<8x128xf32>
    %232 = arith.addf %230, %231 : vector<8x128xf32>
    %233 = arith.negf %232 : vector<8x128xf32>
    %234 = math.exp %233 : vector<8x128xf32>
    %cst_51 = arith.constant 1.000000e+00 : f32
    %235 = vector.broadcast %cst_51 : f32 to vector<8x128xf32>
    %236 = arith.addf %235, %234 : vector<8x128xf32>
    %237 = arith.divf %235, %236 : vector<8x128xf32>
    %238 = math.tanh %232 : vector<8x128xf32>
    %239 = vector.extract_strided_slice %237 {offsets = [0, 0], sizes = [8, 32], strides = [1, 1]} : vector<8x128xf32> to vector<8x32xf32>
    %240 = vector.extract_strided_slice %237 {offsets = [0, 32], sizes = [8, 32], strides = [1, 1]} : vector<8x128xf32> to vector<8x32xf32>
    %241 = vector.extract_strided_slice %237 {offsets = [0, 96], sizes = [8, 32], strides = [1, 1]} : vector<8x128xf32> to vector<8x32xf32>
    %242 = vector.extract_strided_slice %238 {offsets = [0, 64], sizes = [8, 32], strides = [1, 1]} : vector<8x128xf32> to vector<8x32xf32>
    %243 = arith.mulf %240, %207 : vector<8x32xf32>
    %244 = arith.mulf %239, %242 : vector<8x32xf32>
    %245 = arith.addf %243, %244 : vector<8x32xf32>
    %246 = math.tanh %245 : vector<8x32xf32>
    %247 = arith.mulf %241, %246 : vector<8x32xf32>
    %248 = vector.extract_strided_slice %7 {offsets = [48, 0], sizes = [8, 128], strides = [1, 1]} : vector<64x128xf32> to vector<8x128xf32>
    %cst_52 = arith.constant dense<0.000000e+00> : vector<8x128xf32>
    %249 = tpu.matmul %227, %9, %cst_52 {dimension_numbers = #tpu.dot_dimension_numbers<[1], [0], [0], [1], [0, 0, 1, 1], [], []>} : vector<8x32xf32>, vector<32x128xf32>, vector<8x128xf32> -> vector<8x128xf32>
    %250 = arith.addf %248, %249 : vector<8x128xf32>
    %251 = arith.negf %250 : vector<8x128xf32>
    %252 = math.exp %251 : vector<8x128xf32>
    %cst_53 = arith.constant 1.000000e+00 : f32
    %253 = vector.broadcast %cst_53 : f32 to vector<8x128xf32>
    %254 = arith.addf %253, %252 : vector<8x128xf32>
    %255 = arith.divf %253, %254 : vector<8x128xf32>
    %256 = math.tanh %250 : vector<8x128xf32>
    %257 = vector.extract_strided_slice %255 {offsets = [0, 0], sizes = [8, 32], strides = [1, 1]} : vector<8x128xf32> to vector<8x32xf32>
    %258 = vector.extract_strided_slice %255 {offsets = [0, 32], sizes = [8, 32], strides = [1, 1]} : vector<8x128xf32> to vector<8x32xf32>
    %259 = vector.extract_strided_slice %255 {offsets = [0, 96], sizes = [8, 32], strides = [1, 1]} : vector<8x128xf32> to vector<8x32xf32>
    %260 = vector.extract_strided_slice %256 {offsets = [0, 64], sizes = [8, 32], strides = [1, 1]} : vector<8x128xf32> to vector<8x32xf32>
    %261 = arith.mulf %258, %225 : vector<8x32xf32>
    %262 = arith.mulf %257, %260 : vector<8x32xf32>
    %263 = arith.addf %261, %262 : vector<8x32xf32>
    %264 = math.tanh %263 : vector<8x32xf32>
    %265 = arith.mulf %259, %264 : vector<8x32xf32>
    %cst_54 = arith.constant dense<0.000000e+00> : vector<8x128xf32>
    %266 = tpu.matmul %265, %13, %cst_54 {dimension_numbers = #tpu.dot_dimension_numbers<[1], [0], [0], [1], [0, 0, 1, 1], [], []>} : vector<8x32xf32>, vector<32x128xf32>, vector<8x128xf32> -> vector<8x128xf32>
    %cst_55 = arith.constant dense<0.000000e+00> : vector<8x128xf32>
    %267 = tpu.matmul %247, %11, %cst_55 {dimension_numbers = #tpu.dot_dimension_numbers<[1], [0], [0], [1], [0, 0, 1, 1], [], []>} : vector<8x32xf32>, vector<32x128xf32>, vector<8x128xf32> -> vector<8x128xf32>
    %268 = arith.addf %266, %267 : vector<8x128xf32>
    %269 = vector.broadcast %15 : vector<1x128xf32> to vector<8x128xf32>
    %270 = arith.addf %268, %269 : vector<8x128xf32>
    %271 = arith.negf %270 : vector<8x128xf32>
    %272 = math.exp %271 : vector<8x128xf32>
    %cst_56 = arith.constant 1.000000e+00 : f32
    %273 = vector.broadcast %cst_56 : f32 to vector<8x128xf32>
    %274 = arith.addf %273, %272 : vector<8x128xf32>
    %275 = arith.divf %273, %274 : vector<8x128xf32>
    %276 = math.tanh %270 : vector<8x128xf32>
    %277 = vector.extract_strided_slice %275 {offsets = [0, 0], sizes = [8, 32], strides = [1, 1]} : vector<8x128xf32> to vector<8x32xf32>
    %278 = vector.extract_strided_slice %275 {offsets = [0, 32], sizes = [8, 32], strides = [1, 1]} : vector<8x128xf32> to vector<8x32xf32>
    %279 = vector.extract_strided_slice %275 {offsets = [0, 96], sizes = [8, 32], strides = [1, 1]} : vector<8x128xf32> to vector<8x32xf32>
    %280 = vector.extract_strided_slice %276 {offsets = [0, 64], sizes = [8, 32], strides = [1, 1]} : vector<8x128xf32> to vector<8x32xf32>
    %281 = arith.mulf %278, %245 : vector<8x32xf32>
    %282 = arith.mulf %277, %280 : vector<8x32xf32>
    %283 = arith.addf %281, %282 : vector<8x32xf32>
    %284 = math.tanh %283 : vector<8x32xf32>
    %285 = arith.mulf %279, %284 : vector<8x32xf32>
    %286 = vector.extract_strided_slice %7 {offsets = [56, 0], sizes = [8, 128], strides = [1, 1]} : vector<64x128xf32> to vector<8x128xf32>
    %cst_57 = arith.constant dense<0.000000e+00> : vector<8x128xf32>
    %287 = tpu.matmul %265, %9, %cst_57 {dimension_numbers = #tpu.dot_dimension_numbers<[1], [0], [0], [1], [0, 0, 1, 1], [], []>} : vector<8x32xf32>, vector<32x128xf32>, vector<8x128xf32> -> vector<8x128xf32>
    %288 = arith.addf %286, %287 : vector<8x128xf32>
    %289 = arith.negf %288 : vector<8x128xf32>
    %290 = math.exp %289 : vector<8x128xf32>
    %cst_58 = arith.constant 1.000000e+00 : f32
    %291 = vector.broadcast %cst_58 : f32 to vector<8x128xf32>
    %292 = arith.addf %291, %290 : vector<8x128xf32>
    %293 = arith.divf %291, %292 : vector<8x128xf32>
    %294 = math.tanh %288 : vector<8x128xf32>
    %295 = vector.extract_strided_slice %293 {offsets = [0, 0], sizes = [8, 32], strides = [1, 1]} : vector<8x128xf32> to vector<8x32xf32>
    %296 = vector.extract_strided_slice %293 {offsets = [0, 32], sizes = [8, 32], strides = [1, 1]} : vector<8x128xf32> to vector<8x32xf32>
    %297 = vector.extract_strided_slice %293 {offsets = [0, 96], sizes = [8, 32], strides = [1, 1]} : vector<8x128xf32> to vector<8x32xf32>
    %298 = vector.extract_strided_slice %294 {offsets = [0, 64], sizes = [8, 32], strides = [1, 1]} : vector<8x128xf32> to vector<8x32xf32>
    %299 = arith.mulf %296, %263 : vector<8x32xf32>
    %300 = arith.mulf %295, %298 : vector<8x32xf32>
    %301 = arith.addf %299, %300 : vector<8x32xf32>
    %302 = math.tanh %301 : vector<8x32xf32>
    %303 = arith.mulf %297, %302 : vector<8x32xf32>
    %cst_59 = arith.constant dense<0.000000e+00> : vector<8x128xf32>
    %304 = tpu.matmul %303, %13, %cst_59 {dimension_numbers = #tpu.dot_dimension_numbers<[1], [0], [0], [1], [0, 0, 1, 1], [], []>} : vector<8x32xf32>, vector<32x128xf32>, vector<8x128xf32> -> vector<8x128xf32>
    %cst_60 = arith.constant dense<0.000000e+00> : vector<8x128xf32>
    %305 = tpu.matmul %285, %11, %cst_60 {dimension_numbers = #tpu.dot_dimension_numbers<[1], [0], [0], [1], [0, 0, 1, 1], [], []>} : vector<8x32xf32>, vector<32x128xf32>, vector<8x128xf32> -> vector<8x128xf32>
    %306 = arith.addf %304, %305 : vector<8x128xf32>
    %307 = vector.broadcast %15 : vector<1x128xf32> to vector<8x128xf32>
    %308 = arith.addf %306, %307 : vector<8x128xf32>
    %309 = arith.negf %308 : vector<8x128xf32>
    %310 = math.exp %309 : vector<8x128xf32>
    %cst_61 = arith.constant 1.000000e+00 : f32
    %311 = vector.broadcast %cst_61 : f32 to vector<8x128xf32>
    %312 = arith.addf %311, %310 : vector<8x128xf32>
    %313 = arith.divf %311, %312 : vector<8x128xf32>
    %314 = math.tanh %308 : vector<8x128xf32>
    %315 = vector.extract_strided_slice %313 {offsets = [0, 0], sizes = [8, 32], strides = [1, 1]} : vector<8x128xf32> to vector<8x32xf32>
    %316 = vector.extract_strided_slice %313 {offsets = [0, 32], sizes = [8, 32], strides = [1, 1]} : vector<8x128xf32> to vector<8x32xf32>
    %317 = vector.extract_strided_slice %313 {offsets = [0, 96], sizes = [8, 32], strides = [1, 1]} : vector<8x128xf32> to vector<8x32xf32>
    %318 = vector.extract_strided_slice %314 {offsets = [0, 64], sizes = [8, 32], strides = [1, 1]} : vector<8x128xf32> to vector<8x32xf32>
    %319 = arith.mulf %316, %283 : vector<8x32xf32>
    %320 = arith.mulf %315, %318 : vector<8x32xf32>
    %321 = arith.addf %319, %320 : vector<8x32xf32>
    %322 = math.tanh %321 : vector<8x32xf32>
    %323 = arith.mulf %317, %322 : vector<8x32xf32>
    %c0_62 = arith.constant 0 : index
    %c0_63 = arith.constant 0 : index
    %324 = vector.load %arg4[%c0_62, %c0_63] : memref<32x128xf32, #tpu.memory_space<vmem>>, vector<32x128xf32>
    %cst_64 = arith.constant dense<0.000000e+00> : vector<8x128xf32>
    %325 = tpu.matmul %323, %324, %cst_64 {dimension_numbers = #tpu.dot_dimension_numbers<[1], [0], [0], [1], [0, 0, 1, 1], [], []>} : vector<8x32xf32>, vector<32x128xf32>, vector<8x128xf32> -> vector<8x128xf32>
    %c0_65 = arith.constant 0 : index
    %c0_66 = arith.constant 0 : index
    %326 = vector.load %arg5[%c0_65, %c0_66] : memref<8x128xf32, #tpu.memory_space<vmem>>, vector<8x128xf32>
    %327 = arith.addf %325, %326 : vector<8x128xf32>
    %c0_67 = arith.constant 0 : index
    %c0_68 = arith.constant 0 : index
    %328 = vector.load %arg6[%c0_67, %c0_68] : memref<8x128xf32, #tpu.memory_space<vmem>>, vector<8x128xf32>
    tpu.vector_store %arg6[%c0_67, %c0_68], %327 {strides = array<i32>} : memref<8x128xf32, #tpu.memory_space<vmem>>, vector<8x128xf32>,
    return
  }
}

</mosaic_0001>

<llo_original>
// kernel: tpu_custom_call.1
$region0: #{tpu_custom_call.1}
  #allocation0 [shape = 'u32[]', space=smem, size = 0x4, offset = 0x4, fixed_abs, tag = 'smem constant byte address 0x4 - core index']
  #allocation1 [shape = 'u32[144,128]{1,0:T(1,128)}', space=vmem, size = 0x12000, scoped, tag = 'internal scratch']
  %s0 = inlined_call_operand.vmem [shape: f32[64,32], index: 0, kind: input, shape index: {}]
  %s1 = inlined_call_operand.vmem [shape: f32[2,32,128], index: 1, kind: input, shape index: {}]
  %s2 = inlined_call_operand.hbm [shape: f32[2,32,128], index: 2, kind: input, shape index: {}]
  %s3 = inlined_call_operand.vmem [shape: f32[2,1,128], index: 3, kind: input, shape index: {}]
  %s4 = inlined_call_operand.vmem [shape: f32[32,128], index: 4, kind: input, shape index: {}]
  %s5 = inlined_call_operand.vmem [shape: f32[8,128], index: 5, kind: input, shape index: {}]
  %s6 = inlined_call_operand.hbm [shape: f32[8,128], index: 6, kind: output, shape index: {}]
  %s7 = sld [smem:[#allocation0]]
  $region38: #{tpu_custom_call.1} parent=0
    _
  %s9 = ssub.s32 1, %s7
  %s10 = scalar_select 0, %s9, %s7
  $region1: #{tpu_custom_call.1} parent=0
    #allocation2 [shape = 'u8[32768]{0}', space=vmem, size = 0x8000, scoped, tag = 'input window, operand 2, single buffered']
    #allocation3 [shape = 's32[1]{0}', space=sflag, size = 0x4, scoped, tag = 'scoped memory for tpu_custom_call.1']
    #allocation4 [shape = 's32[1]{0}', space=sflag, size = 0x4, scoped, tag = 'scoped memory for tpu_custom_call.1']
    #allocation5 [shape = 'u8[4096]{0}', space=vmem, size = 0x1000, scoped, tag = 'output window, operand 0, single buffered']
    %11 = vsyncpa [#allocation3], 0
    %12 = vsyncpa [#allocation4], 0
    // Predicated region
    $region2: #{tpu_custom_call.1} parent=1 // pred_check
      _
    $region3: #{tpu_custom_call.1} parent=1 // pred_check_branch
      %14 = sbr.rel (0) target = $region5
    $region4: #{tpu_custom_call.1} parent=1 // pred_region
      _
    $region5: #{tpu_custom_call.1} parent=1 // pred_fallthru
      _
    // Predicated region
    $region6: #{tpu_custom_call.1} parent=1 // pred_check
      _
    $region7: #{tpu_custom_call.1} parent=1 // pred_check_branch
      %16 = sbr.rel (0) target = $region9
    $region8: #{tpu_custom_call.1} parent=1 // pred_region
      _
    $region9: #{tpu_custom_call.1} parent=1 // pred_fallthru
      _
    // Predicated region
    $region10: #{tpu_custom_call.1} parent=1 // pred_check
      _
    $region11: #{tpu_custom_call.1} parent=1 // pred_check_branch
      %18 = sbr.rel (0) target = $region13
    $region12: #{tpu_custom_call.1} parent=1 // pred_region
      %s20 = ssub.s32 1024, 1024
      %21 = vsyncadd [#allocation3], %s20
      %s22 = sshll.u32 [#allocation2], 4
      %s23 = int_to_ptr.vmem [resolvable:$true] %s22
      %28 = dma.hbm_to_vmem [thread:$0]  %s2, 1024, %s23, [#allocation3], 128, 128, 8
    $region13: #{tpu_custom_call.1} parent=1 // pred_fallthru
      _
    // Predicated region
    $region14: #{tpu_custom_call.1} parent=1 // pred_check
      _
    $region15: #{tpu_custom_call.1} parent=1 // pred_check_branch
      %30 = sbr.rel (0) target = $region17
    $region16: #{tpu_custom_call.1} parent=1 // pred_region
      _
    $region17: #{tpu_custom_call.1} parent=1 // pred_fallthru
      _
    // Predicated region
    $region18: #{tpu_custom_call.1} parent=1 // pred_check
      _
    $region19: #{tpu_custom_call.1} parent=1 // pred_check_branch
      %32 = sbr.rel (0) target = $region21
    $region20: #{tpu_custom_call.1} parent=1 // pred_region
      _
    $region21: #{tpu_custom_call.1} parent=1 // pred_fallthru
      _
    // Predicated region
    $region22: #{tpu_custom_call.1} parent=1 // pred_check
      _
    $region23: #{tpu_custom_call.1} parent=1 // pred_check_branch
      %34 = sbr.rel (0) target = $region25
    $region24: #{tpu_custom_call.1} parent=1 // pred_region
      _
    $region25: #{tpu_custom_call.1} parent=1 // pred_fallthru
      _
    // Predicated region
    $region26: #{tpu_custom_call.1} parent=1 // pred_check
      _
    $region27: #{tpu_custom_call.1} parent=1 // pred_check_branch
      %36 = sbr.rel (0) target = $region29
    $region28: #{tpu_custom_call.1} parent=1 // pred_region
      %37 = dma.done [#allocation3], 1024
    $region29: #{tpu_custom_call.1} parent=1 // pred_fallthru
      _
    %v38 = vld [vmem:[%s0] sm:$0xff]
    %v39 = vld [vmem:[%s0 + $0x8] sm:$0xff]
    %v40 = vld [vmem:[%s0 + $0x10] sm:$0xff]
    %v41 = vld [vmem:[%s0 + $0x18] sm:$0xff]
    %v42 = vld [vmem:[%s0 + $0x20] sm:$0xff]
    %v43 = vld [vmem:[%s0 + $0x28] sm:$0xff]
    %v44 = vld [vmem:[%s0 + $0x30] sm:$0xff]
    %v45 = vld [vmem:[%s0 + $0x38] sm:$0xff]
    %v46 = vld [vmem:[%s1] sm:$0xff]
    %v47 = vld [vmem:[%s1 + $0x8] sm:$0xff]
    %v48 = vld [vmem:[%s1 + $0x10] sm:$0xff]
    %v49 = vld [vmem:[%s1 + $0x18] sm:$0xff]
    %v50 = vld [vmem:[%s3] sm:$0x1]
    %v52 = vlaneseq
    %v53 = vshrl.u32 %v52, 7
    %v54 = vsub.s32 0, %v53
    %v55 = vrot.slane %v50, %v54
    %vm57 = vcmask 261120
    %v59 = vsel %vm57, %v38, 0
    %v62 = vsel %vm57, %v39, 0
    %v65 = vsel %vm57, %v40, 0
    %v68 = vsel %vm57, %v41, 0
    %v71 = vsel %vm57, %v42, 0
    %v74 = vsel %vm57, %v43, 0
    %v77 = vsel %vm57, %v44, 0
    %v80 = vsel %vm57, %v45, 0
    %82 = vmatprep.subr.mxu0 0.0
    %83 = vmatpush1.msra.mxu0 %v46
    %84 = vmatprep.subr.mxu0 0.0
    %85 = vmatpush1.msra.mxu0 %v47
    %86 = vmatprep.subr.mxu0 0.0
    %87 = vmatpush1.msra.mxu0 %v48
    %88 = vmatprep.subr.mxu0 0.0
    %89 = vmatpush1.msra.mxu0 %v49
    %90 = vmatprep.subr.mxu0 0.0
    %91 = vmatpush1.msra.mxu0 0.0
    %92 = vmatprep.subr.mxu0 0.0
    %93 = vmatpush1.msra.mxu0 0.0
    %94 = vmatprep.subr.mxu0 0.0
    %95 = vmatpush1.msra.mxu0 0.0
    %96 = vmatprep.subr.mxu0 0.0
    %97 = vmatpush1.msra.mxu0 0.0
    %98 = vmatprep.subr.mxu0 0.0
    %99 = vmatpush1.msra.mxu0 0.0
    %100 = vmatprep.subr.mxu0 0.0
    %101 = vmatpush1.msra.mxu0 0.0
    %102 = vmatprep.subr.mxu0 0.0
    %103 = vmatpush1.msra.mxu0 0.0
    %104 = vmatprep.subr.mxu0 0.0
    %105 = vmatpush1.msra.mxu0 0.0
    %106 = vmatprep.subr.mxu0 0.0
    %107 = vmatpush1.msra.mxu0 0.0
    %108 = vmatprep.subr.mxu0 0.0
    %109 = vmatpush1.msra.mxu0 0.0
    %110 = vmatprep.subr.mxu0 0.0
    %111 = vmatpush1.msra.mxu0 0.0
    %112 = vmatprep.subr.mxu0 0.0
    %113 = vmatpush1.msra.mxu0 0.0
    %114 = vmatprep.subr.mxu0 0.0
    %115 = vmatpush1.msra.mxu0 0.0
    %116 = vmatprep.subr.mxu0 0.0
    %117 = vmatpush1.msra.mxu0 0.0
    %118 = vmatprep.subr.mxu0 0.0
    %119 = vmatpush1.msra.mxu0 0.0
    %120 = vmatprep.subr.mxu0 0.0
    %121 = vmatpush1.msra.mxu0 0.0
    %122 = vmatprep.subr.mxu0 0.0
    %123 = vmatpush1.msra.mxu0 0.0
    %124 = vmatprep.subr.mxu0 0.0
    %125 = vmatpush1.msra.mxu0 0.0
    %126 = vmatprep.subr.mxu0 0.0
    %127 = vmatpush1.msra.mxu0 0.0
    %128 = vmatprep.subr.mxu0 0.0
    %129 = vmatpush1.msra.mxu0 0.0
    %130 = vmatprep.subr.mxu0 0.0
    %131 = vmatpush1.msra.mxu0 0.0
    %132 = vmatprep.subr.mxu0 0.0
    %133 = vmatpush1.msra.mxu0 0.0
    %134 = vmatprep.subr.mxu0 0.0
    %135 = vmatpush1.msra.mxu0 0.0
    %136 = vmatprep.subr.mxu0 0.0
    %137 = vmatpush1.msra.mxu0 0.0
    %138 = vmatprep.subr.mxu0 0.0
    %139 = vmatpush1.msra.mxu0 0.0
    %140 = vmatprep.subr.mxu0 0.0
    %141 = vmatpush1.msra.mxu0 0.0
    %142 = vmatprep.subr.mxu0 0.0
    %143 = vmatpush1.msra.mxu0 0.0
    %144 = vmatprep.subr.mxu0 0.0
    %145 = vmatpush1.msra.mxu0 0.0
    %146 = vmatprep.mubr.f32.mxu0 0.0
    %147 = vmatmul.mubr.f32.gmra.mrb[0].mxu0 %v59
    %v148 = vpop.f32.mrb[0].mxu0
    %v149 = vadd.f32 %v55, %v148
    %v150 = vpop.f32.mrb[0].mxu0
    %151 = vmatprep.mubr.f32.mxu0 0.0
    %152 = vmatmul.mubr.f32.gmra.mrb[0].mxu0 %v62
    %v153 = vpop.f32.mrb[0].mxu0
    %v154 = vadd.f32 %v55, %v153
    %v155 = vpop.f32.mrb[0].mxu0
    %156 = vmatprep.mubr.f32.mxu0 0.0
    %157 = vmatmul.mubr.f32.gmra.mrb[0].mxu0 %v65
    %v158 = vpop.f32.mrb[0].mxu0
    %v159 = vadd.f32 %v55, %v158
    %v160 = vpop.f32.mrb[0].mxu0
    %161 = vmatprep.mubr.f32.mxu0 0.0
    %162 = vmatmul.mubr.f32.gmra.mrb[0].mxu0 %v68
    %v163 = vpop.f32.mrb[0].mxu0
    %v164 = vadd.f32 %v55, %v163
    %v165 = vpop.f32.mrb[0].mxu0
    %166 = vmatprep.mubr.f32.mxu0 0.0
    %167 = vmatmul.mubr.f32.gmra.mrb[0].mxu0 %v71
    %v168 = vpop.f32.mrb[0].mxu0
    %v169 = vadd.f32 %v55, %v168
    %v170 = vpop.f32.mrb[0].mxu0
    %171 = vmatprep.mubr.f32.mxu0 0.0
    %172 = vmatmul.mubr.f32.gmra.mrb[0].mxu0 %v74
    %v173 = vpop.f32.mrb[0].mxu0
    %v174 = vadd.f32 %v55, %v173
    %v175 = vpop.f32.mrb[0].mxu0
    %176 = vmatprep.mubr.f32.mxu0 0.0
    %177 = vmatmul.mubr.f32.gmra.mrb[0].mxu0 %v77
    %v178 = vpop.f32.mrb[0].mxu0
    %v179 = vadd.f32 %v55, %v178
    %v180 = vpop.f32.mrb[0].mxu0
    %181 = vmatprep.mubr.f32.mxu0 0.0
    %182 = vmatmul.mubr.f32.gmra.mrb[0].mxu0 %v80
    %v183 = vpop.f32.mrb[0].mxu0
    %v184 = vadd.f32 %v55, %v183
    %v185 = vpop.f32.mrb[0].mxu0
    %186 = vdwg.mxu0
    %v187 = vld [vmem:[#allocation2] sm:$0xff]
    %v188 = vld [vmem:[#allocation2 + $0x8] sm:$0xff]
    %v189 = vld [vmem:[#allocation2 + $0x10] sm:$0xff]
    %v190 = vld [vmem:[#allocation2 + $0x18] sm:$0xff]
    %s191 = scalar_lea.vmem [#allocation2], 32
    %v192 = vld [vmem:[%s191] sm:$0xff]
    %v193 = vld [vmem:[%s191 + $0x8] sm:$0xff]
    %v194 = vld [vmem:[%s191 + $0x10] sm:$0xff]
    %v195 = vld [vmem:[%s191 + $0x18] sm:$0xff]
    %s196 = scalar_lea.vmem %s1, 32
    %v197 = vld [vmem:[%s196] sm:$0xff]
    %v198 = vld [vmem:[%s196 + $0x8] sm:$0xff]
    %v199 = vld [vmem:[%s196 + $0x10] sm:$0xff]
    %v200 = vld [vmem:[%s196 + $0x18] sm:$0xff]
    %s201 = scalar_lea.vmem %s3, 1
    %v202 = vld [vmem:[%s201] sm:$0x1]
    %v204 = vsel %vm57, 0.0, 0
    %206 = vmatprep.subr.mxu0 0.0
    %207 = vmatpush1.msra.mxu0 %v187
    %208 = vmatprep.subr.mxu0 0.0
    %209 = vmatpush1.msra.mxu0 %v188
    %210 = vmatprep.subr.mxu0 0.0
    %211 = vmatpush1.msra.mxu0 %v189
    %212 = vmatprep.subr.mxu0 0.0
    %213 = vmatpush1.msra.mxu0 %v190
    %214 = vmatprep.subr.mxu0 0.0
    %215 = vmatpush1.msra.mxu0 0.0
    %216 = vmatprep.subr.mxu0 0.0
    %217 = vmatpush1.msra.mxu0 0.0
    %218 = vmatprep.subr.mxu0 0.0
    %219 = vmatpush1.msra.mxu0 0.0
    %220 = vmatprep.subr.mxu0 0.0
    %221 = vmatpush1.msra.mxu0 0.0
    %222 = vmatprep.subr.mxu0 0.0
    %223 = vmatpush1.msra.mxu0 0.0
    %224 = vmatprep.subr.mxu0 0.0
    %225 = vmatpush1.msra.mxu0 0.0
    %226 = vmatprep.subr.mxu0 0.0
    %227 = vmatpush1.msra.mxu0 0.0
    %228 = vmatprep.subr.mxu0 0.0
    %229 = vmatpush1.msra.mxu0 0.0
    %230 = vmatprep.subr.mxu0 0.0
    %231 = vmatpush1.msra.mxu0 0.0
    %232 = vmatprep.subr.mxu0 0.0
    %233 = vmatpush1.msra.mxu0 0.0
    %234 = vmatprep.subr.mxu0 0.0
    %235 = vmatpush1.msra.mxu0 0.0
    %236 = vmatprep.subr.mxu0 0.0
    %237 = vmatpush1.msra.mxu0 0.0
    %238 = vmatprep.subr.mxu0 0.0
    %239 = vmatpush1.msra.mxu0 0.0
    %240 = vmatprep.subr.mxu0 0.0
    %241 = vmatpush1.msra.mxu0 0.0
    %242 = vmatprep.subr.mxu0 0.0
    %243 = vmatpush1.msra.mxu0 0.0
    %244 = vmatprep.subr.mxu0 0.0
    %245 = vmatpush1.msra.mxu0 0.0
    %246 = vmatprep.subr.mxu0 0.0
    %247 = vmatpush1.msra.mxu0 0.0
    %248 = vmatprep.subr.mxu0 0.0
    %249 = vmatpush1.msra.mxu0 0.0
    %250 = vmatprep.subr.mxu0 0.0
    %251 = vmatpush1.msra.mxu0 0.0
    %252 = vmatprep.subr.mxu0 0.0
    %253 = vmatpush1.msra.mxu0 0.0
    %254 = vmatprep.subr.mxu0 0.0
    %255 = vmatpush1.msra.mxu0 0.0
    %256 = vmatprep.subr.mxu0 0.0
    %257 = vmatpush1.msra.mxu0 0.0
    %258 = vmatprep.subr.mxu0 0.0
    %259 = vmatpush1.msra.mxu0 0.0
    %260 = vmatprep.subr.mxu0 0.0
    %261 = vmatpush1.msra.mxu0 0.0
    %262 = vmatprep.subr.mxu0 0.0
    %263 = vmatpush1.msra.mxu0 0.0
    %264 = vmatprep.subr.mxu0 0.0
    %265 = vmatpush1.msra.mxu0 0.0
    %266 = vmatprep.subr.mxu0 0.0
    %267 = vmatpush1.msra.mxu0 0.0
    %268 = vmatprep.subr.mxu0 0.0
    %269 = vmatpush1.msra.mxu0 0.0
    %270 = vmatprep.mubr.f32.mxu0 0.0
    %271 = vmatmul.mubr.f32.gmra.mrb[0].mxu0 %v204
    %v272 = vpop.f32.mrb[0].mxu0
    %v273 = vadd.f32 0.0, %v272
    %v274 = vpop.f32.mrb[0].mxu0
    %275 = vdwg.mxu0
    %v276 = vadd.f32 %v149, %v273
    %v277 = vxor.u32 %v276, 2147483648
    %v278 = vmul.f32 %v277, 1.442695
    %v279 = vpow.pop %v278
    %v280 = vadd.f32 %v279, 1.0
    %v281 = vrcp.pop %v280
    %v282 = vmul.f32 1.0, %v281
    %v283 = vtanh.pop %v276
    %v284 = vmul.f32 %v282, 0.0
    %286 = vrot.lane.b32.xlu0 %v283, 64
    %v287 = vpop.permute.xlu0 %286
    %v289 = vmul.f32 %v282, %v287
    %291 = vrot.lane.b32.xlu0 %v289, 32
    %v292 = vpop.permute.xlu0 %291
    %v294 = vadd.f32 %v284, %v292
    %v295 = vtanh.pop %v294
    %297 = vrot.lane.b32.xlu0 %v295, 64
    %v298 = vpop.permute.xlu0 %297
    %v300 = vmul.f32 %v282, %v298
    %301 = vmatprep.subr.mxu0 0.0
    %302 = vmatpush1.msra.mxu0 %v192
    %303 = vmatprep.subr.mxu0 0.0
    %304 = vmatpush1.msra.mxu0 %v193
    %305 = vmatprep.subr.mxu0 0.0
    %306 = vmatpush1.msra.mxu0 %v194
    %307 = vmatprep.subr.mxu0 0.0
    %308 = vmatpush1.msra.mxu0 %v195
    %309 = vmatprep.subr.mxu0 0.0
    %310 = vmatpush1.msra.mxu0 0.0
    %311 = vmatprep.subr.mxu0 0.0
    %312 = vmatpush1.msra.mxu0 0.0
    %313 = vmatprep.subr.mxu0 0.0
    %314 = vmatpush1.msra.mxu0 0.0
    %315 = vmatprep.subr.mxu0 0.0
    %316 = vmatpush1.msra.mxu0 0.0
    %317 = vmatprep.subr.mxu0 0.0
    %318 = vmatpush1.msra.mxu0 0.0
    %319 = vmatprep.subr.mxu0 0.0
    %320 = vmatpush1.msra.mxu0 0.0
    %321 = vmatprep.subr.mxu0 0.0
    %322 = vmatpush1.msra.mxu0 0.0
    %323 = vmatprep.subr.mxu0 0.0
    %324 = vmatpush1.msra.mxu0 0.0
    %325 = vmatprep.subr.mxu0 0.0
    %326 = vmatpush1.msra.mxu0 0.0
    %327 = vmatprep.subr.mxu0 0.0
    %328 = vmatpush1.msra.mxu0 0.0
    %329 = vmatprep.subr.mxu0 0.0
    %330 = vmatpush1.msra.mxu0 0.0
    %331 = vmatprep.subr.mxu0 0.0
    %332 = vmatpush1.msra.mxu0 0.0
    %333 = vmatprep.subr.mxu0 0.0
    %334 = vmatpush1.msra.mxu0 0.0
    %335 = vmatprep.subr.mxu0 0.0
    %336 = vmatpush1.msra.mxu0 0.0
    %337 = vmatprep.subr.mxu0 0.0
    %338 = vmatpush1.msra.mxu0 0.0
    %339 = vmatprep.subr.mxu0 0.0
    %340 = vmatpush1.msra.mxu0 0.0
    %341 = vmatprep.subr.mxu0 0.0
    %342 = vmatpush1.msra.mxu0 0.0
    %343 = vmatprep.subr.mxu0 0.0
    %344 = vmatpush1.msra.mxu0 0.0
    %345 = vmatprep.subr.mxu0 0.0
    %346 = vmatpush1.msra.mxu0 0.0
    %347 = vmatprep.subr.mxu0 0.0
    %348 = vmatpush1.msra.mxu0 0.0
    %349 = vmatprep.subr.mxu0 0.0
    %350 = vmatpush1.msra.mxu0 0.0
    %351 = vmatprep.subr.mxu0 0.0
    %352 = vmatpush1.msra.mxu0 0.0
    %353 = vmatprep.subr.mxu0 0.0
    %354 = vmatpush1.msra.mxu0 0.0
    %355 = vmatprep.subr.mxu0 0.0
    %356 = vmatpush1.msra.mxu0 0.0
    %357 = vmatprep.subr.mxu0 0.0
    %358 = vmatpush1.msra.mxu0 0.0
    %359 = vmatprep.subr.mxu0 0.0
    %360 = vmatpush1.msra.mxu0 0.0
    %361 = vmatprep.subr.mxu0 0.0
    %362 = vmatpush1.msra.mxu0 0.0
    %363 = vmatprep.subr.mxu0 0.0
    %364 = vmatpush1.msra.mxu0 0.0
    %365 = vmatprep.mubr.f32.mxu0 0.0
    %366 = vmatmul.mubr.f32.gmra.mrb[0].mxu0 %v204
    %v367 = vpop.f32.mrb[0].mxu0
    %v368 = vadd.f32 0.0, %v367
    %v369 = vpop.f32.mrb[0].mxu0
    %370 = vdwg.mxu0
    %372 = vrot.lane.b32.xlu0 %v300, 32
    %v373 = vpop.permute.xlu0 %372
    %v374 = vsel %vm57, %v373, 0
    %376 = vmatprep.subr.mxu0 0.0
    %377 = vmatpush1.msra.mxu0 %v197
    %378 = vmatprep.subr.mxu0 0.0
    %379 = vmatpush1.msra.mxu0 %v198
    %380 = vmatprep.subr.mxu0 0.0
    %381 = vmatpush1.msra.mxu0 %v199
    %382 = vmatprep.subr.mxu0 0.0
    %383 = vmatpush1.msra.mxu0 %v200
    %384 = vmatprep.subr.mxu0 0.0
    %385 = vmatpush1.msra.mxu0 0.0
    %386 = vmatprep.subr.mxu0 0.0
    %387 = vmatpush1.msra.mxu0 0.0
    %388 = vmatprep.subr.mxu0 0.0
    %389 = vmatpush1.msra.mxu0 0.0
    %390 = vmatprep.subr.mxu0 0.0
    %391 = vmatpush1.msra.mxu0 0.0
    %392 = vmatprep.subr.mxu0 0.0
    %393 = vmatpush1.msra.mxu0 0.0
    %394 = vmatprep.subr.mxu0 0.0
    %395 = vmatpush1.msra.mxu0 0.0
    %396 = vmatprep.subr.mxu0 0.0
    %397 = vmatpush1.msra.mxu0 0.0
    %398 = vmatprep.subr.mxu0 0.0
    %399 = vmatpush1.msra.mxu0 0.0
    %400 = vmatprep.subr.mxu0 0.0
    %401 = vmatpush1.msra.mxu0 0.0
    %402 = vmatprep.subr.mxu0 0.0
    %403 = vmatpush1.msra.mxu0 0.0
    %404 = vmatprep.subr.mxu0 0.0
    %405 = vmatpush1.msra.mxu0 0.0
    %406 = vmatprep.subr.mxu0 0.0
    %407 = vmatpush1.msra.mxu0 0.0
    %408 = vmatprep.subr.mxu0 0.0
    %409 = vmatpush1.msra.mxu0 0.0
    %410 = vmatprep.subr.mxu0 0.0
    %411 = vmatpush1.msra.mxu0 0.0
    %412 = vmatprep.subr.mxu0 0.0
    %413 = vmatpush1.msra.mxu0 0.0
    %414 = vmatprep.subr.mxu0 0.0
    %415 = vmatpush1.msra.mxu0 0.0
    %416 = vmatprep.subr.mxu0 0.0
    %417 = vmatpush1.msra.mxu0 0.0
    %418 = vmatprep.subr.mxu0 0.0
    %419 = vmatpush1.msra.mxu0 0.0
    %420 = vmatprep.subr.mxu0 0.0
    %421 = vmatpush1.msra.mxu0 0.0
    %422 = vmatprep.subr.mxu0 0.0
    %423 = vmatpush1.msra.mxu0 0.0
    %424 = vmatprep.subr.mxu0 0.0
    %425 = vmatpush1.msra.mxu0 0.0
    %426 = vmatprep.subr.mxu0 0.0
    %427 = vmatpush1.msra.mxu0 0.0
    %428 = vmatprep.subr.mxu0 0.0
    %429 = vmatpush1.msra.mxu0 0.0
    %430 = vmatprep.subr.mxu0 0.0
    %431 = vmatpush1.msra.mxu0 0.0
    %432 = vmatprep.subr.mxu0 0.0
    %433 = vmatpush1.msra.mxu0 0.0
    %434 = vmatprep.subr.mxu0 0.0
    %435 = vmatpush1.msra.mxu0 0.0
    %436 = vmatprep.subr.mxu0 0.0
    %437 = vmatpush1.msra.mxu0 0.0
    %438 = vmatprep.subr.mxu0 0.0
    %439 = vmatpush1.msra.mxu0 0.0
    %440 = vmatprep.mubr.f32.mxu0 0.0
    %441 = vmatmul.mubr.f32.gmra.mrb[0].mxu0 %v374
    %v442 = vpop.f32.mrb[0].mxu0
    %v443 = vadd.f32 %v368, %v442
    %v444 = vpop.f32.mrb[0].mxu0
    %445 = vdwg.mxu0
    %v447 = vlaneseq
    %v448 = vshrl.u32 %v447, 7
    %v449 = vsub.s32 0, %v448
    %v450 = vrot.slane %v202, %v449
    %v452 = vadd.f32 %v443, %v450
    %v453 = vxor.u32 %v452, 2147483648
    %v454 = vmul.f32 %v453, 1.442695
    %v455 = vpow.pop %v454
    %v456 = vadd.f32 %v455, 1.0
    %v457 = vrcp.pop %v456
    %v458 = vmul.f32 1.0, %v457
    %v459 = vtanh.pop %v452
    %v460 = vmul.f32 %v458, 0.0
    %462 = vrot.lane.b32.xlu0 %v459, 64
    %v463 = vpop.permute.xlu0 %462
    %v465 = vmul.f32 %v458, %v463
    %467 = vrot.lane.b32.xlu0 %v465, 32
    %v468 = vpop.permute.xlu0 %467
    %v470 = vadd.f32 %v460, %v468
    %v471 = vtanh.pop %v470
    %473 = vrot.lane.b32.xlu0 %v471, 64
    %v474 = vpop.permute.xlu0 %473
    %v476 = vmul.f32 %v458, %v474
    %477 = vmatprep.subr.mxu0 0.0
    %478 = vmatpush1.msra.mxu0 %v187
    %479 = vmatprep.subr.mxu0 0.0
    %480 = vmatpush1.msra.mxu0 %v188
    %481 = vmatprep.subr.mxu0 0.0
    %482 = vmatpush1.msra.mxu0 %v189
    %483 = vmatprep.subr.mxu0 0.0
    %484 = vmatpush1.msra.mxu0 %v190
    %485 = vmatprep.subr.mxu0 0.0
    %486 = vmatpush1.msra.mxu0 0.0
    %487 = vmatprep.subr.mxu0 0.0
    %488 = vmatpush1.msra.mxu0 0.0
    %489 = vmatprep.subr.mxu0 0.0
    %490 = vmatpush1.msra.mxu0 0.0
    %491 = vmatprep.subr.mxu0 0.0
    %492 = vmatpush1.msra.mxu0 0.0
    %493 = vmatprep.subr.mxu0 0.0
    %494 = vmatpush1.msra.mxu0 0.0
    %495 = vmatprep.subr.mxu0 0.0
    %496 = vmatpush1.msra.mxu0 0.0
    %497 = vmatprep.subr.mxu0 0.0
    %498 = vmatpush1.msra.mxu0 0.0
    %499 = vmatprep.subr.mxu0 0.0
    %500 = vmatpush1.msra.mxu0 0.0
    %501 = vmatprep.subr.mxu0 0.0
    %502 = vmatpush1.msra.mxu0 0.0
    %503 = vmatprep.subr.mxu0 0.0
    %504 = vmatpush1.msra.mxu0 0.0
    %505 = vmatprep.subr.mxu0 0.0
    %506 = vmatpush1.msra.mxu0 0.0
    %507 = vmatprep.subr.mxu0 0.0
    %508 = vmatpush1.msra.mxu0 0.0
    %509 = vmatprep.subr.mxu0 0.0
    %510 = vmatpush1.msra.mxu0 0.0
    %511 = vmatprep.subr.mxu0 0.0
    %512 = vmatpush1.msra.mxu0 0.0
    %513 = vmatprep.subr.mxu0 0.0
    %514 = vmatpush1.msra.mxu0 0.0
    %515 = vmatprep.subr.mxu0 0.0
    %516 = vmatpush1.msra.mxu0 0.0
    %517 = vmatprep.subr.mxu0 0.0
    %518 = vmatpush1.msra.mxu0 0.0
    %519 = vmatprep.subr.mxu0 0.0
    %520 = vmatpush1.msra.mxu0 0.0
    %521 = vmatprep.subr.mxu0 0.0
    %522 = vmatpush1.msra.mxu0 0.0
    %523 = vmatprep.subr.mxu0 0.0
    %524 = vmatpush1.msra.mxu0 0.0
    %525 = vmatprep.subr.mxu0 0.0
    %526 = vmatpush1.msra.mxu0 0.0
    %527 = vmatprep.subr.mxu0 0.0
    %528 = vmatpush1.msra.mxu0 0.0
    %529 = vmatprep.subr.mxu0 0.0
    %530 = vmatpush1.msra.mxu0 0.0
    %531 = vmatprep.subr.mxu0 0.0
    %532 = vmatpush1.msra.mxu0 0.0
    %533 = vmatprep.subr.mxu0 0.0
    %534 = vmatpush1.msra.mxu0 0.0
    %535 = vmatprep.subr.mxu0 0.0
    %536 = vmatpush1.msra.mxu0 0.0
    %537 = vmatprep.subr.mxu0 0.0
    %538 = vmatpush1.msra.mxu0 0.0
    %539 = vmatprep.subr.mxu0 0.0
    %540 = vmatpush1.msra.mxu0 0.0
    %541 = vmatprep.mubr.f32.mxu0 0.0
    %542 = vmatmul.mubr.f32.gmra.mrb[0].mxu0 %v374
    %v543 = vpop.f32.mrb[0].mxu0
    %v544 = vadd.f32 0.0, %v543
    %v545 = vpop.f32.mrb[0].mxu0
    %546 = vdwg.mxu0
    %v547 = vadd.f32 %v154, %v544
    %v548 = vxor.u32 %v547, 2147483648
    %v549 = vmul.f32 %v548, 1.442695
    %v550 = vpow.pop %v549
    %v551 = vadd.f32 %v550, 1.0
    %v552 = vrcp.pop %v551
    %v553 = vmul.f32 1.0, %v552
    %v554 = vtanh.pop %v547
    %v555 = vmul.f32 %v553, %v294
    %557 = vrot.lane.b32.xlu0 %v554, 64
    %v558 = vpop.permute.xlu0 %557
    %v560 = vmul.f32 %v553, %v558
    %562 = vrot.lane.b32.xlu0 %v560, 32
    %v563 = vpop.permute.xlu0 %562
    %v565 = vadd.f32 %v555, %v563
    %v566 = vtanh.pop %v565
    %568 = vrot.lane.b32.xlu0 %v566, 64
    %v569 = vpop.permute.xlu0 %568
    %v571 = vmul.f32 %v553, %v569
    %573 = vrot.lane.b32.xlu0 %v476, 32
    %v574 = vpop.permute.xlu0 %573
    %v575 = vsel %vm57, %v574, 0
    %577 = vmatprep.subr.mxu0 0.0
    %578 = vmatpush1.msra.mxu0 %v192
    %579 = vmatprep.subr.mxu0 0.0
    %580 = vmatpush1.msra.mxu0 %v193
    %581 = vmatprep.subr.mxu0 0.0
    %582 = vmatpush1.msra.mxu0 %v194
    %583 = vmatprep.subr.mxu0 0.0
    %584 = vmatpush1.msra.mxu0 %v195
    %585 = vmatprep.subr.mxu0 0.0
    %586 = vmatpush1.msra.mxu0 0.0
    %587 = vmatprep.subr.mxu0 0.0
    %588 = vmatpush1.msra.mxu0 0.0
    %589 = vmatprep.subr.mxu0 0.0
    %590 = vmatpush1.msra.mxu0 0.0
    %591 = vmatprep.subr.mxu0 0.0
    %592 = vmatpush1.msra.mxu0 0.0
    %593 = vmatprep.subr.mxu0 0.0
    %594 = vmatpush1.msra.mxu0 0.0
    %595 = vmatprep.subr.mxu0 0.0
    %596 = vmatpush1.msra.mxu0 0.0
    %597 = vmatprep.subr.mxu0 0.0
    %598 = vmatpush1.msra.mxu0 0.0
    %599 = vmatprep.subr.mxu0 0.0
    %600 = vmatpush1.msra.mxu0 0.0
    %601 = vmatprep.subr.mxu0 0.0
    %602 = vmatpush1.msra.mxu0 0.0
    %603 = vmatprep.subr.mxu0 0.0
    %604 = vmatpush1.msra.mxu0 0.0
    %605 = vmatprep.subr.mxu0 0.0
    %606 = vmatpush1.msra.mxu0 0.0
    %607 = vmatprep.subr.mxu0 0.0
    %608 = vmatpush1.msra.mxu0 0.0
    %609 = vmatprep.subr.mxu0 0.0
    %610 = vmatpush1.msra.mxu0 0.0
    %611 = vmatprep.subr.mxu0 0.0
    %612 = vmatpush1.msra.mxu0 0.0
    %613 = vmatprep.subr.mxu0 0.0
    %614 = vmatpush1.msra.mxu0 0.0
    %615 = vmatprep.subr.mxu0 0.0
    %616 = vmatpush1.msra.mxu0 0.0
    %617 = vmatprep.subr.mxu0 0.0
    %618 = vmatpush1.msra.mxu0 0.0
    %619 = vmatprep.subr.mxu0 0.0
    %620 = vmatpush1.msra.mxu0 0.0
    %621 = vmatprep.subr.mxu0 0.0
    %622 = vmatpush1.msra.mxu0 0.0
    %623 = vmatprep.subr.mxu0 0.0
    %624 = vmatpush1.msra.mxu0 0.0
    %625 = vmatprep.subr.mxu0 0.0
    %626 = vmatpush1.msra.mxu0 0.0
    %627 = vmatprep.subr.mxu0 0.0
    %628 = vmatpush1.msra.mxu0 0.0
    %629 = vmatprep.subr.mxu0 0.0
    %630 = vmatpush1.msra.mxu0 0.0
    %631 = vmatprep.subr.mxu0 0.0
    %632 = vmatpush1.msra.mxu0 0.0
    %633 = vmatprep.subr.mxu0 0.0
    %634 = vmatpush1.msra.mxu0 0.0
    %635 = vmatprep.subr.mxu0 0.0
    %636 = vmatpush1.msra.mxu0 0.0
    %637 = vmatprep.subr.mxu0 0.0
    %638 = vmatpush1.msra.mxu0 0.0
    %639 = vmatprep.subr.mxu0 0.0
    %640 = vmatpush1.msra.mxu0 0.0
    %641 = vmatprep.mubr.f32.mxu0 0.0
    %642 = vmatmul.mubr.f32.gmra.mrb[0].mxu0 %v575
    %v643 = vpop.f32.mrb[0].mxu0
    %v644 = vadd.f32 0.0, %v643
    %v645 = vpop.f32.mrb[0].mxu0
    %646 = vdwg.mxu0
    %648 = vrot.lane.b32.xlu0 %v571, 32
    %v649 = vpop.permute.xlu0 %648
    %v650 = vsel %vm57, %v649, 0
    %652 = vmatprep.subr.mxu0 0.0
    %653 = vmatpush1.msra.mxu0 %v197
    %654 = vmatprep.subr.mxu0 0.0
    %655 = vmatpush1.msra.mxu0 %v198
    %656 = vmatprep.subr.mxu0 0.0
    %657 = vmatpush1.msra.mxu0 %v199
    %658 = vmatprep.subr.mxu0 0.0
    %659 = vmatpush1.msra.mxu0 %v200
    %660 = vmatprep.subr.mxu0 0.0
    %661 = vmatpush1.msra.mxu0 0.0
    %662 = vmatprep.subr.mxu0 0.0
    %663 = vmatpush1.msra.mxu0 0.0
    %664 = vmatprep.subr.mxu0 0.0
    %665 = vmatpush1.msra.mxu0 0.0
    %666 = vmatprep.subr.mxu0 0.0
    %667 = vmatpush1.msra.mxu0 0.0
    %668 = vmatprep.subr.mxu0 0.0
    %669 = vmatpush1.msra.mxu0 0.0
    %670 = vmatprep.subr.mxu0 0.0
    %671 = vmatpush1.msra.mxu0 0.0
    %672 = vmatprep.subr.mxu0 0.0
    %673 = vmatpush1.msra.mxu0 0.0
    %674 = vmatprep.subr.mxu0 0.0
    %675 = vmatpush1.msra.mxu0 0.0
    %676 = vmatprep.subr.mxu0 0.0
    %677 = vmatpush1.msra.mxu0 0.0
    %678 = vmatprep.subr.mxu0 0.0
    %679 = vmatpush1.msra.mxu0 0.0
    %680 = vmatprep.subr.mxu0 0.0
    %681 = vmatpush1.msra.mxu0 0.0
    %682 = vmatprep.subr.mxu0 0.0
    %683 = vmatpush1.msra.mxu0 0.0
    %684 = vmatprep.subr.mxu0 0.0
    %685 = vmatpush1.msra.mxu0 0.0
    %686 = vmatprep.subr.mxu0 0.0
    %687 = vmatpush1.msra.mxu0 0.0
    %688 = vmatprep.subr.mxu0 0.0
    %689 = vmatpush1.msra.mxu0 0.0
    %690 = vmatprep.subr.mxu0 0.0
    %691 = vmatpush1.msra.mxu0 0.0
    %692 = vmatprep.subr.mxu0 0.0
    %693 = vmatpush1.msra.mxu0 0.0
    %694 = vmatprep.subr.mxu0 0.0
    %695 = vmatpush1.msra.mxu0 0.0
    %696 = vmatprep.subr.mxu0 0.0
    %697 = vmatpush1.msra.mxu0 0.0
    %698 = vmatprep.subr.mxu0 0.0
    %699 = vmatpush1.msra.mxu0 0.0
    %700 = vmatprep.subr.mxu0 0.0
    %701 = vmatpush1.msra.mxu0 0.0
    %702 = vmatprep.subr.mxu0 0.0
    %703 = vmatpush1.msra.mxu0 0.0
    %704 = vmatprep.subr.mxu0 0.0
    %705 = vmatpush1.msra.mxu0 0.0
    %706 = vmatprep.subr.mxu0 0.0
    %707 = vmatpush1.msra.mxu0 0.0
    %708 = vmatprep.subr.mxu0 0.0
    %709 = vmatpush1.msra.mxu0 0.0
    %710 = vmatprep.subr.mxu0 0.0
    %711 = vmatpush1.msra.mxu0 0.0
    %712 = vmatprep.subr.mxu0 0.0
    %713 = vmatpush1.msra.mxu0 0.0
    %714 = vmatprep.subr.mxu0 0.0
    %715 = vmatpush1.msra.mxu0 0.0
    %716 = vmatprep.mubr.f32.mxu0 0.0
    %717 = vmatmul.mubr.f32.gmra.mrb[0].mxu0 %v650
    %v718 = vpop.f32.mrb[0].mxu0
    %v719 = vadd.f32 %v644, %v718
    %v720 = vpop.f32.mrb[0].mxu0
    %721 = vdwg.mxu0
    %v722 = vadd.f32 %v719, %v450
    %v723 = vxor.u32 %v722, 2147483648
    %v724 = vmul.f32 %v723, 1.442695
    %v725 = vpow.pop %v724
    %v726 = vadd.f32 %v725, 1.0
    %v727 = vrcp.pop %v726
    %v728 = vmul.f32 1.0, %v727
    %v729 = vtanh.pop %v722
    %v730 = vmul.f32 %v728, %v470
    %732 = vrot.lane.b32.xlu0 %v729, 64
    %v733 = vpop.permute.xlu0 %732
    %v735 = vmul.f32 %v728, %v733
    %737 = vrot.lane.b32.xlu0 %v735, 32
    %v738 = vpop.permute.xlu0 %737
    %v740 = vadd.f32 %v730, %v738
    %v741 = vtanh.pop %v740
    %743 = vrot.lane.b32.xlu0 %v741, 64
    %v744 = vpop.permute.xlu0 %743
    %v746 = vmul.f32 %v728, %v744
    %747 = vmatprep.subr.mxu0 0.0
    %748 = vmatpush1.msra.mxu0 %v187
    %749 = vmatprep.subr.mxu0 0.0
    %750 = vmatpush1.msra.mxu0 %v188
    %751 = vmatprep.subr.mxu0 0.0
    %752 = vmatpush1.msra.mxu0 %v189
    %753 = vmatprep.subr.mxu0 0.0
    %754 = vmatpush1.msra.mxu0 %v190
    %755 = vmatprep.subr.mxu0 0.0
    %756 = vmatpush1.msra.mxu0 0.0
    %757 = vmatprep.subr.mxu0 0.0
    %758 = vmatpush1.msra.mxu0 0.0
    %759 = vmatprep.subr.mxu0 0.0
    %760 = vmatpush1.msra.mxu0 0.0
    %761 = vmatprep.subr.mxu0 0.0
    %762 = vmatpush1.msra.mxu0 0.0
    %763 = vmatprep.subr.mxu0 0.0
    %764 = vmatpush1.msra.mxu0 0.0
    %765 = vmatprep.subr.mxu0 0.0
    %766 = vmatpush1.msra.mxu0 0.0
    %767 = vmatprep.subr.mxu0 0.0
    %768 = vmatpush1.msra.mxu0 0.0
    %769 = vmatprep.subr.mxu0 0.0
    %770 = vmatpush1.msra.mxu0 0.0
    %771 = vmatprep.subr.mxu0 0.0
    %772 = vmatpush1.msra.mxu0 0.0
    %773 = vmatprep.subr.mxu0 0.0
    %774 = vmatpush1.msra.mxu0 0.0
    %775 = vmatprep.subr.mxu0 0.0
    %776 = vmatpush1.msra.mxu0 0.0
    %777 = vmatprep.subr.mxu0 0.0
    %778 = vmatpush1.msra.mxu0 0.0
    %779 = vmatprep.subr.mxu0 0.0
    %780 = vmatpush1.msra.mxu0 0.0
    %781 = vmatprep.subr.mxu0 0.0
    %782 = vmatpush1.msra.mxu0 0.0
    %783 = vmatprep.subr.mxu0 0.0
    %784 = vmatpush1.msra.mxu0 0.0
    %785 = vmatprep.subr.mxu0 0.0
    %786 = vmatpush1.msra.mxu0 0.0
    %787 = vmatprep.subr.mxu0 0.0
    %788 = vmatpush1.msra.mxu0 0.0
    %789 = vmatprep.subr.mxu0 0.0
    %790 = vmatpush1.msra.mxu0 0.0
    %791 = vmatprep.subr.mxu0 0.0
    %792 = vmatpush1.msra.mxu0 0.0
    %793 = vmatprep.subr.mxu0 0.0
    %794 = vmatpush1.msra.mxu0 0.0
    %795 = vmatprep.subr.mxu0 0.0
    %796 = vmatpush1.msra.mxu0 0.0
    %797 = vmatprep.subr.mxu0 0.0
    %798 = vmatpush1.msra.mxu0 0.0
    %799 = vmatprep.subr.mxu0 0.0
    %800 = vmatpush1.msra.mxu0 0.0
    %801 = vmatprep.subr.mxu0 0.0
    %802 = vmatpush1.msra.mxu0 0.0
    %803 = vmatprep.subr.mxu0 0.0
    %804 = vmatpush1.msra.mxu0 0.0
    %805 = vmatprep.subr.mxu0 0.0
    %806 = vmatpush1.msra.mxu0 0.0
    %807 = vmatprep.subr.mxu0 0.0
    %808 = vmatpush1.msra.mxu0 0.0
    %809 = vmatprep.subr.mxu0 0.0
    %810 = vmatpush1.msra.mxu0 0.0
    %811 = vmatprep.mubr.f32.mxu0 0.0
    %812 = vmatmul.mubr.f32.gmra.mrb[0].mxu0 %v650
    %v813 = vpop.f32.mrb[0].mxu0
    %v814 = vadd.f32 0.0, %v813
    %v815 = vpop.f32.mrb[0].mxu0
    %816 = vdwg.mxu0
    %v817 = vadd.f32 %v159, %v814
    %v818 = vxor.u32 %v817, 2147483648
    %v819 = vmul.f32 %v818, 1.442695
    %v820 = vpow.pop %v819
    %v821 = vadd.f32 %v820, 1.0
    %v822 = vrcp.pop %v821
    %v823 = vmul.f32 1.0, %v822
    %v824 = vtanh.pop %v817
    %v825 = vmul.f32 %v823, %v565
    %827 = vrot.lane.b32.xlu0 %v824, 64
    %v828 = vpop.permute.xlu0 %827
    %v830 = vmul.f32 %v823, %v828
    %832 = vrot.lane.b32.xlu0 %v830, 32
    %v833 = vpop.permute.xlu0 %832
    %v835 = vadd.f32 %v825, %v833
    %v836 = vtanh.pop %v835
    %838 = vrot.lane.b32.xlu0 %v836, 64
    %v839 = vpop.permute.xlu0 %838
    %v841 = vmul.f32 %v823, %v839
    %843 = vrot.lane.b32.xlu0 %v746, 32
    %v844 = vpop.permute.xlu0 %843
    %v845 = vsel %vm57, %v844, 0
    %847 = vmatprep.subr.mxu0 0.0
    %848 = vmatpush1.msra.mxu0 %v192
    %849 = vmatprep.subr.mxu0 0.0
    %850 = vmatpush1.msra.mxu0 %v193
    %851 = vmatprep.subr.mxu0 0.0
    %852 = vmatpush1.msra.mxu0 %v194
    %853 = vmatprep.subr.mxu0 0.0
    %854 = vmatpush1.msra.mxu0 %v195
    %855 = vmatprep.subr.mxu0 0.0
    %856 = vmatpush1.msra.mxu0 0.0
    %857 = vmatprep.subr.mxu0 0.0
    %858 = vmatpush1.msra.mxu0 0.0
    %859 = vmatprep.subr.mxu0 0.0
    %860 = vmatpush1.msra.mxu0 0.0
    %861 = vmatprep.subr.mxu0 0.0
    %862 = vmatpush1.msra.mxu0 0.0
    %863 = vmatprep.subr.mxu0 0.0
    %864 = vmatpush1.msra.mxu0 0.0
    %865 = vmatprep.subr.mxu0 0.0
    %866 = vmatpush1.msra.mxu0 0.0
    %867 = vmatprep.subr.mxu0 0.0
    %868 = vmatpush1.msra.mxu0 0.0
    %869 = vmatprep.subr.mxu0 0.0
    %870 = vmatpush1.msra.mxu0 0.0
    %871 = vmatprep.subr.mxu0 0.0
    %872 = vmatpush1.msra.mxu0 0.0
    %873 = vmatprep.subr.mxu0 0.0
    %874 = vmatpush1.msra.mxu0 0.0
    %875 = vmatprep.subr.mxu0 0.0
    %876 = vmatpush1.msra.mxu0 0.0
    %877 = vmatprep.subr.mxu0 0.0
    %878 = vmatpush1.msra.mxu0 0.0
    %879 = vmatprep.subr.mxu0 0.0
    %880 = vmatpush1.msra.mxu0 0.0
    %881 = vmatprep.subr.mxu0 0.0
    %882 = vmatpush1.msra.mxu0 0.0
    %883 = vmatprep.subr.mxu0 0.0
    %884 = vmatpush1.msra.mxu0 0.0
    %885 = vmatprep.subr.mxu0 0.0
    %886 = vmatpush1.msra.mxu0 0.0
    %887 = vmatprep.subr.mxu0 0.0
    %888 = vmatpush1.msra.mxu0 0.0
    %889 = vmatprep.subr.mxu0 0.0
    %890 = vmatpush1.msra.mxu0 0.0
    %891 = vmatprep.subr.mxu0 0.0
    %892 = vmatpush1.msra.mxu0 0.0
    %893 = vmatprep.subr.mxu0 0.0
    %894 = vmatpush1.msra.mxu0 0.0
    %895 = vmatprep.subr.mxu0 0.0
    %896 = vmatpush1.msra.mxu0 0.0
    %897 = vmatprep.subr.mxu0 0.0
    %898 = vmatpush1.msra.mxu0 0.0
    %899 = vmatprep.subr.mxu0 0.0
    %900 = vmatpush1.msra.mxu0 0.0
    %901 = vmatprep.subr.mxu0 0.0
    %902 = vmatpush1.msra.mxu0 0.0
    %903 = vmatprep.subr.mxu0 0.0
    %904 = vmatpush1.msra.mxu0 0.0
    %905 = vmatprep.subr.mxu0 0.0
    %906 = vmatpush1.msra.mxu0 0.0
    %907 = vmatprep.subr.mxu0 0.0
    %908 = vmatpush1.msra.mxu0 0.0
    %909 = vmatprep.subr.mxu0 0.0
    %910 = vmatpush1.msra.mxu0 0.0
    %911 = vmatprep.mubr.f32.mxu0 0.0
    %912 = vmatmul.mubr.f32.gmra.mrb[0].mxu0 %v845
    %v913 = vpop.f32.mrb[0].mxu0
    %v914 = vadd.f32 0.0, %v913
    %v915 = vpop.f32.mrb[0].mxu0
    %916 = vdwg.mxu0
    %918 = vrot.lane.b32.xlu0 %v841, 32
    %v919 = vpop.permute.xlu0 %918
    %v920 = vsel %vm57, %v919, 0
    %922 = vmatprep.subr.mxu0 0.0
    %923 = vmatpush1.msra.mxu0 %v197
    %924 = vmatprep.subr.mxu0 0.0
    %925 = vmatpush1.msra.mxu0 %v198
    %926 = vmatprep.subr.mxu0 0.0
    %927 = vmatpush1.msra.mxu0 %v199
    %928 = vmatprep.subr.mxu0 0.0
    %929 = vmatpush1.msra.mxu0 %v200
    %930 = vmatprep.subr.mxu0 0.0
    %931 = vmatpush1.msra.mxu0 0.0
    %932 = vmatprep.subr.mxu0 0.0
    %933 = vmatpush1.msra.mxu0 0.0
    %934 = vmatprep.subr.mxu0 0.0
    %935 = vmatpush1.msra.mxu0 0.0
    %936 = vmatprep.subr.mxu0 0.0
    %937 = vmatpush1.msra.mxu0 0.0
    %938 = vmatprep.subr.mxu0 0.0
    %939 = vmatpush1.msra.mxu0 0.0
    %940 = vmatprep.subr.mxu0 0.0
    %941 = vmatpush1.msra.mxu0 0.0
    %942 = vmatprep.subr.mxu0 0.0
    %943 = vmatpush1.msra.mxu0 0.0
    %944 = vmatprep.subr.mxu0 0.0
    %945 = vmatpush1.msra.mxu0 0.0
    %946 = vmatprep.subr.mxu0 0.0
    %947 = vmatpush1.msra.mxu0 0.0
    %948 = vmatprep.subr.mxu0 0.0
    %949 = vmatpush1.msra.mxu0 0.0
    %950 = vmatprep.subr.mxu0 0.0
    %951 = vmatpush1.msra.mxu0 0.0
    %952 = vmatprep.subr.mxu0 0.0
    %953 = vmatpush1.msra.mxu0 0.0
    %954 = vmatprep.subr.mxu0 0.0
    %955 = vmatpush1.msra.mxu0 0.0
    %956 = vmatprep.subr.mxu0 0.0
    %957 = vmatpush1.msra.mxu0 0.0
    %958 = vmatprep.subr.mxu0 0.0
    %959 = vmatpush1.msra.mxu0 0.0
    %960 = vmatprep.subr.mxu0 0.0
    %961 = vmatpush1.msra.mxu0 0.0
    %962 = vmatprep.subr.mxu0 0.0
    %963 = vmatpush1.msra.mxu0 0.0
    %964 = vmatprep.subr.mxu0 0.0
    %965 = vmatpush1.msra.mxu0 0.0
    %966 = vmatprep.subr.mxu0 0.0
    %967 = vmatpush1.msra.mxu0 0.0
    %968 = vmatprep.subr.mxu0 0.0
    %969 = vmatpush1.msra.mxu0 0.0
    %970 = vmatprep.subr.mxu0 0.0
    %971 = vmatpush1.msra.mxu0 0.0
    %972 = vmatprep.subr.mxu0 0.0
    %973 = vmatpush1.msra.mxu0 0.0
    %974 = vmatprep.subr.mxu0 0.0
    %975 = vmatpush1.msra.mxu0 0.0
    %976 = vmatprep.subr.mxu0 0.0
    %977 = vmatpush1.msra.mxu0 0.0
    %978 = vmatprep.subr.mxu0 0.0
    %979 = vmatpush1.msra.mxu0 0.0
    %980 = vmatprep.subr.mxu0 0.0
    %981 = vmatpush1.msra.mxu0 0.0
    %982 = vmatprep.subr.mxu0 0.0
    %983 = vmatpush1.msra.mxu0 0.0
    %984 = vmatprep.subr.mxu0 0.0
    %985 = vmatpush1.msra.mxu0 0.0
    %986 = vmatprep.mubr.f32.mxu0 0.0
    %987 = vmatmul.mubr.f32.gmra.mrb[0].mxu0 %v920
    %v988 = vpop.f32.mrb[0].mxu0
    %v989 = vadd.f32 %v914, %v988
    %v990 = vpop.f32.mrb[0].mxu0
    %991 = vdwg.mxu0
    %v992 = vadd.f32 %v989, %v450
    %v993 = vxor.u32 %v992, 2147483648
    %v994 = vmul.f32 %v993, 1.442695
    %v995 = vpow.pop %v994
    %v996 = vadd.f32 %v995, 1.0
    %v997 = vrcp.pop %v996
    %v998 = vmul.f32 1.0, %v997
    %v999 = vtanh.pop %v992
    %v1000 = vmul.f32 %v998, %v740
    %1002 = vrot.lane.b32.xlu0 %v999, 64
    %v1003 = vpop.permute.xlu0 %1002
    %v1005 = vmul.f32 %v998, %v1003
    %1007 = vrot.lane.b32.xlu0 %v1005, 32
    %v1008 = vpop.permute.xlu0 %1007
    %v1010 = vadd.f32 %v1000, %v1008
    %v1011 = vtanh.pop %v1010
    %1013 = vrot.lane.b32.xlu0 %v1011, 64
    %v1014 = vpop.permute.xlu0 %1013
    %v1016 = vmul.f32 %v998, %v1014
    %1017 = vmatprep.subr.mxu0 0.0
    %1018 = vmatpush1.msra.mxu0 %v187
    %1019 = vmatprep.subr.mxu0 0.0
    %1020 = vmatpush1.msra.mxu0 %v188
    %1021 = vmatprep.subr.mxu0 0.0
    %1022 = vmatpush1.msra.mxu0 %v189
    %1023 = vmatprep.subr.mxu0 0.0
    %1024 = vmatpush1.msra.mxu0 %v190
    %1025 = vmatprep.subr.mxu0 0.0
    %1026 = vmatpush1.msra.mxu0 0.0
    %1027 = vmatprep.subr.mxu0 0.0
    %1028 = vmatpush1.msra.mxu0 0.0
    %1029 = vmatprep.subr.mxu0 0.0
    %1030 = vmatpush1.msra.mxu0 0.0
    %1031 = vmatprep.subr.mxu0 0.0
    %1032 = vmatpush1.msra.mxu0 0.0
    %1033 = vmatprep.subr.mxu0 0.0
    %1034 = vmatpush1.msra.mxu0 0.0
    %1035 = vmatprep.subr.mxu0 0.0
    %1036 = vmatpush1.msra.mxu0 0.0
    %1037 = vmatprep.subr.mxu0 0.0
    %1038 = vmatpush1.msra.mxu0 0.0
    %1039 = vmatprep.subr.mxu0 0.0
    %1040 = vmatpush1.msra.mxu0 0.0
    %1041 = vmatprep.subr.mxu0 0.0
    %1042 = vmatpush1.msra.mxu0 0.0
    %1043 = vmatprep.subr.mxu0 0.0
    %1044 = vmatpush1.msra.mxu0 0.0
    %1045 = vmatprep.subr.mxu0 0.0
    %1046 = vmatpush1.msra.mxu0 0.0
    %1047 = vmatprep.subr.mxu0 0.0
    %1048 = vmatpush1.msra.mxu0 0.0
    %1049 = vmatprep.subr.mxu0 0.0
    %1050 = vmatpush1.msra.mxu0 0.0
    %1051 = vmatprep.subr.mxu0 0.0
    %1052 = vmatpush1.msra.mxu0 0.0
    %1053 = vmatprep.subr.mxu0 0.0
    %1054 = vmatpush1.msra.mxu0 0.0
    %1055 = vmatprep.subr.mxu0 0.0
    %1056 = vmatpush1.msra.mxu0 0.0
    %1057 = vmatprep.subr.mxu0 0.0
    %1058 = vmatpush1.msra.mxu0 0.0
    %1059 = vmatprep.subr.mxu0 0.0
    %1060 = vmatpush1.msra.mxu0 0.0
    %1061 = vmatprep.subr.mxu0 0.0
    %1062 = vmatpush1.msra.mxu0 0.0
    %1063 = vmatprep.subr.mxu0 0.0
    %1064 = vmatpush1.msra.mxu0 0.0
    %1065 = vmatprep.subr.mxu0 0.0
    %1066 = vmatpush1.msra.mxu0 0.0
    %1067 = vmatprep.subr.mxu0 0.0
    %1068 = vmatpush1.msra.mxu0 0.0
    %1069 = vmatprep.subr.mxu0 0.0
    %1070 = vmatpush1.msra.mxu0 0.0
    %1071 = vmatprep.subr.mxu0 0.0
    %1072 = vmatpush1.msra.mxu0 0.0
    %1073 = vmatprep.subr.mxu0 0.0
    %1074 = vmatpush1.msra.mxu0 0.0
    %1075 = vmatprep.subr.mxu0 0.0
    %1076 = vmatpush1.msra.mxu0 0.0
    %1077 = vmatprep.subr.mxu0 0.0
    %1078 = vmatpush1.msra.mxu0 0.0
    %1079 = vmatprep.subr.mxu0 0.0
    %1080 = vmatpush1.msra.mxu0 0.0
    %1081 = vmatprep.mubr.f32.mxu0 0.0
    %1082 = vmatmul.mubr.f32.gmra.mrb[0].mxu0 %v920
    %v1083 = vpop.f32.mrb[0].mxu0
    %v1084 = vadd.f32 0.0, %v1083
    %v1085 = vpop.f32.mrb[0].mxu0
    %1086 = vdwg.mxu0
    %v1087 = vadd.f32 %v164, %v1084
    %v1088 = vxor.u32 %v1087, 2147483648
    %v1089 = vmul.f32 %v1088, 1.442695
    %v1090 = vpow.pop %v1089
    %v1091 = vadd.f32 %v1090, 1.0
    %v1092 = vrcp.pop %v1091
    %v1093 = vmul.f32 1.0, %v1092
    %v1094 = vtanh.pop %v1087
    %v1095 = vmul.f32 %v1093, %v835
    %1097 = vrot.lane.b32.xlu0 %v1094, 64
    %v1098 = vpop.permute.xlu0 %1097
    %v1100 = vmul.f32 %v1093, %v1098
    %1102 = vrot.lane.b32.xlu0 %v1100, 32
    %v1103 = vpop.permute.xlu0 %1102
    %v1105 = vadd.f32 %v1095, %v1103
    %v1106 = vtanh.pop %v1105
    %1108 = vrot.lane.b32.xlu0 %v1106, 64
    %v1109 = vpop.permute.xlu0 %1108
    %v1111 = vmul.f32 %v1093, %v1109
    %1113 = vrot.lane.b32.xlu0 %v1016, 32
    %v1114 = vpop.permute.xlu0 %1113
    %v1115 = vsel %vm57, %v1114, 0
    %1117 = vmatprep.subr.mxu0 0.0
    %1118 = vmatpush1.msra.mxu0 %v192
    %1119 = vmatprep.subr.mxu0 0.0
    %1120 = vmatpush1.msra.mxu0 %v193
    %1121 = vmatprep.subr.mxu0 0.0
    %1122 = vmatpush1.msra.mxu0 %v194
    %1123 = vmatprep.subr.mxu0 0.0
    %1124 = vmatpush1.msra.mxu0 %v195
    %1125 = vmatprep.subr.mxu0 0.0
    %1126 = vmatpush1.msra.mxu0 0.0
    %1127 = vmatprep.subr.mxu0 0.0
    %1128 = vmatpush1.msra.mxu0 0.0
    %1129 = vmatprep.subr.mxu0 0.0
    %1130 = vmatpush1.msra.mxu0 0.0
    %1131 = vmatprep.subr.mxu0 0.0
    %1132 = vmatpush1.msra.mxu0 0.0
    %1133 = vmatprep.subr.mxu0 0.0
    %1134 = vmatpush1.msra.mxu0 0.0
    %1135 = vmatprep.subr.mxu0 0.0
    %1136 = vmatpush1.msra.mxu0 0.0
    %1137 = vmatprep.subr.mxu0 0.0
    %1138 = vmatpush1.msra.mxu0 0.0
    %1139 = vmatprep.subr.mxu0 0.0
    %1140 = vmatpush1.msra.mxu0 0.0
    %1141 = vmatprep.subr.mxu0 0.0
    %1142 = vmatpush1.msra.mxu0 0.0
    %1143 = vmatprep.subr.mxu0 0.0
    %1144 = vmatpush1.msra.mxu0 0.0
    %1145 = vmatprep.subr.mxu0 0.0
    %1146 = vmatpush1.msra.mxu0 0.0
    %1147 = vmatprep.subr.mxu0 0.0
    %1148 = vmatpush1.msra.mxu0 0.0
    %1149 = vmatprep.subr.mxu0 0.0
    %1150 = vmatpush1.msra.mxu0 0.0
    %1151 = vmatprep.subr.mxu0 0.0
    %1152 = vmatpush1.msra.mxu0 0.0
    %1153 = vmatprep.subr.mxu0 0.0
    %1154 = vmatpush1.msra.mxu0 0.0
    %1155 = vmatprep.subr.mxu0 0.0
    %1156 = vmatpush1.msra.mxu0 0.0
    %1157 = vmatprep.subr.mxu0 0.0
    %1158 = vmatpush1.msra.mxu0 0.0
    %1159 = vmatprep.subr.mxu0 0.0
    %1160 = vmatpush1.msra.mxu0 0.0
    %1161 = vmatprep.subr.mxu0 0.0
    %1162 = vmatpush1.msra.mxu0 0.0
    %1163 = vmatprep.subr.mxu0 0.0
    %1164 = vmatpush1.msra.mxu0 0.0
    %1165 = vmatprep.subr.mxu0 0.0
    %1166 = vmatpush1.msra.mxu0 0.0
    %1167 = vmatprep.subr.mxu0 0.0
    %1168 = vmatpush1.msra.mxu0 0.0
    %1169 = vmatprep.subr.mxu0 0.0
    %1170 = vmatpush1.msra.mxu0 0.0
    %1171 = vmatprep.subr.mxu0 0.0
    %1172 = vmatpush1.msra.mxu0 0.0
    %1173 = vmatprep.subr.mxu0 0.0
    %1174 = vmatpush1.msra.mxu0 0.0
    %1175 = vmatprep.subr.mxu0 0.0
    %1176 = vmatpush1.msra.mxu0 0.0
    %1177 = vmatprep.subr.mxu0 0.0
    %1178 = vmatpush1.msra.mxu0 0.0
    %1179 = vmatprep.subr.mxu0 0.0
    %1180 = vmatpush1.msra.mxu0 0.0
    %1181 = vmatprep.mubr.f32.mxu0 0.0
    %1182 = vmatmul.mubr.f32.gmra.mrb[0].mxu0 %v1115
    %v1183 = vpop.f32.mrb[0].mxu0
    %v1184 = vadd.f32 0.0, %v1183
    %v1185 = vpop.f32.mrb[0].mxu0
    %1186 = vdwg.mxu0
    %1188 = vrot.lane.b32.xlu0 %v1111, 32
    %v1189 = vpop.permute.xlu0 %1188
    %v1190 = vsel %vm57, %v1189, 0
    %1192 = vmatprep.subr.mxu0 0.0
    %1193 = vmatpush1.msra.mxu0 %v197
    %1194 = vmatprep.subr.mxu0 0.0
    %1195 = vmatpush1.msra.mxu0 %v198
    %1196 = vmatprep.subr.mxu0 0.0
    %1197 = vmatpush1.msra.mxu0 %v199
    %1198 = vmatprep.subr.mxu0 0.0
    %1199 = vmatpush1.msra.mxu0 %v200
    %1200 = vmatprep.subr.mxu0 0.0
    %1201 = vmatpush1.msra.mxu0 0.0
    %1202 = vmatprep.subr.mxu0 0.0
    %1203 = vmatpush1.msra.mxu0 0.0
    %1204 = vmatprep.subr.mxu0 0.0
    %1205 = vmatpush1.msra.mxu0 0.0
    %1206 = vmatprep.subr.mxu0 0.0
    %1207 = vmatpush1.msra.mxu0 0.0
    %1208 = vmatprep.subr.mxu0 0.0
    %1209 = vmatpush1.msra.mxu0 0.0
    %1210 = vmatprep.subr.mxu0 0.0
    %1211 = vmatpush1.msra.mxu0 0.0
    %1212 = vmatprep.subr.mxu0 0.0
    %1213 = vmatpush1.msra.mxu0 0.0
    %1214 = vmatprep.subr.mxu0 0.0
    %1215 = vmatpush1.msra.mxu0 0.0
    %1216 = vmatprep.subr.mxu0 0.0
    %1217 = vmatpush1.msra.mxu0 0.0
    %1218 = vmatprep.subr.mxu0 0.0
    %1219 = vmatpush1.msra.mxu0 0.0
    %1220 = vmatprep.subr.mxu0 0.0
    %1221 = vmatpush1.msra.mxu0 0.0
    %1222 = vmatprep.subr.mxu0 0.0
    %1223 = vmatpush1.msra.mxu0 0.0
    %1224 = vmatprep.subr.mxu0 0.0
    %1225 = vmatpush1.msra.mxu0 0.0
    %1226 = vmatprep.subr.mxu0 0.0
    %1227 = vmatpush1.msra.mxu0 0.0
    %1228 = vmatprep.subr.mxu0 0.0
    %1229 = vmatpush1.msra.mxu0 0.0
    %1230 = vmatprep.subr.mxu0 0.0
    %1231 = vmatpush1.msra.mxu0 0.0
    %1232 = vmatprep.subr.mxu0 0.0
    %1233 = vmatpush1.msra.mxu0 0.0
    %1234 = vmatprep.subr.mxu0 0.0
    %1235 = vmatpush1.msra.mxu0 0.0
    %1236 = vmatprep.subr.mxu0 0.0
    %1237 = vmatpush1.msra.mxu0 0.0
    %1238 = vmatprep.subr.mxu0 0.0
    %1239 = vmatpush1.msra.mxu0 0.0
    %1240 = vmatprep.subr.mxu0 0.0
    %1241 = vmatpush1.msra.mxu0 0.0
    %1242 = vmatprep.subr.mxu0 0.0
    %1243 = vmatpush1.msra.mxu0 0.0
    %1244 = vmatprep.subr.mxu0 0.0
    %1245 = vmatpush1.msra.mxu0 0.0
    %1246 = vmatprep.subr.mxu0 0.0
    %1247 = vmatpush1.msra.mxu0 0.0
    %1248 = vmatprep.subr.mxu0 0.0
    %1249 = vmatpush1.msra.mxu0 0.0
    %1250 = vmatprep.subr.mxu0 0.0
    %1251 = vmatpush1.msra.mxu0 0.0
    %1252 = vmatprep.subr.mxu0 0.0
    %1253 = vmatpush1.msra.mxu0 0.0
    %1254 = vmatprep.subr.mxu0 0.0
    %1255 = vmatpush1.msra.mxu0 0.0
    %1256 = vmatprep.mubr.f32.mxu0 0.0
    %1257 = vmatmul.mubr.f32.gmra.mrb[0].mxu0 %v1190
    %v1258 = vpop.f32.mrb[0].mxu0
    %v1259 = vadd.f32 %v1184, %v1258
    %v1260 = vpop.f32.mrb[0].mxu0
    %1261 = vdwg.mxu0
    %v1262 = vadd.f32 %v1259, %v450
    %v1263 = vxor.u32 %v1262, 2147483648
    %v1264 = vmul.f32 %v1263, 1.442695
    %v1265 = vpow.pop %v1264
    %v1266 = vadd.f32 %v1265, 1.0
    %v1267 = vrcp.pop %v1266
    %v1268 = vmul.f32 1.0, %v1267
    %v1269 = vtanh.pop %v1262
    %v1270 = vmul.f32 %v1268, %v1010
    %1272 = vrot.lane.b32.xlu0 %v1269, 64
    %v1273 = vpop.permute.xlu0 %1272
    %v1275 = vmul.f32 %v1268, %v1273
    %1277 = vrot.lane.b32.xlu0 %v1275, 32
    %v1278 = vpop.permute.xlu0 %1277
    %v1280 = vadd.f32 %v1270, %v1278
    %v1281 = vtanh.pop %v1280
    %1283 = vrot.lane.b32.xlu0 %v1281, 64
    %v1284 = vpop.permute.xlu0 %1283
    %v1286 = vmul.f32 %v1268, %v1284
    %1287 = vmatprep.subr.mxu0 0.0
    %1288 = vmatpush1.msra.mxu0 %v187
    %1289 = vmatprep.subr.mxu0 0.0
    %1290 = vmatpush1.msra.mxu0 %v188
    %1291 = vmatprep.subr.mxu0 0.0
    %1292 = vmatpush1.msra.mxu0 %v189
    %1293 = vmatprep.subr.mxu0 0.0
    %1294 = vmatpush1.msra.mxu0 %v190
    %1295 = vmatprep.subr.mxu0 0.0
    %1296 = vmatpush1.msra.mxu0 0.0
    %1297 = vmatprep.subr.mxu0 0.0
    %1298 = vmatpush1.msra.mxu0 0.0
    %1299 = vmatprep.subr.mxu0 0.0
    %1300 = vmatpush1.msra.mxu0 0.0
    %1301 = vmatprep.subr.mxu0 0.0
    %1302 = vmatpush1.msra.mxu0 0.0
    %1303 = vmatprep.subr.mxu0 0.0
    %1304 = vmatpush1.msra.mxu0 0.0
    %1305 = vmatprep.subr.mxu0 0.0
    %1306 = vmatpush1.msra.mxu0 0.0
    %1307 = vmatprep.subr.mxu0 0.0
    %1308 = vmatpush1.msra.mxu0 0.0
    %1309 = vmatprep.subr.mxu0 0.0
    %1310 = vmatpush1.msra.mxu0 0.0
    %1311 = vmatprep.subr.mxu0 0.0
    %1312 = vmatpush1.msra.mxu0 0.0
    %1313 = vmatprep.subr.mxu0 0.0
    %1314 = vmatpush1.msra.mxu0 0.0
    %1315 = vmatprep.subr.mxu0 0.0
    %1316 = vmatpush1.msra.mxu0 0.0
    %1317 = vmatprep.subr.mxu0 0.0
    %1318 = vmatpush1.msra.mxu0 0.0
    %1319 = vmatprep.subr.mxu0 0.0
    %1320 = vmatpush1.msra.mxu0 0.0
    %1321 = vmatprep.subr.mxu0 0.0
    %1322 = vmatpush1.msra.mxu0 0.0
    %1323 = vmatprep.subr.mxu0 0.0
    %1324 = vmatpush1.msra.mxu0 0.0
    %1325 = vmatprep.subr.mxu0 0.0
    %1326 = vmatpush1.msra.mxu0 0.0
    %1327 = vmatprep.subr.mxu0 0.0
    %1328 = vmatpush1.msra.mxu0 0.0
    %1329 = vmatprep.subr.mxu0 0.0
    %1330 = vmatpush1.msra.mxu0 0.0
    %1331 = vmatprep.subr.mxu0 0.0
    %1332 = vmatpush1.msra.mxu0 0.0
    %1333 = vmatprep.subr.mxu0 0.0
    %1334 = vmatpush1.msra.mxu0 0.0
    %1335 = vmatprep.subr.mxu0 0.0
    %1336 = vmatpush1.msra.mxu0 0.0
    %1337 = vmatprep.subr.mxu0 0.0
    %1338 = vmatpush1.msra.mxu0 0.0
    %1339 = vmatprep.subr.mxu0 0.0
    %1340 = vmatpush1.msra.mxu0 0.0
    %1341 = vmatprep.subr.mxu0 0.0
    %1342 = vmatpush1.msra.mxu0 0.0
    %1343 = vmatprep.subr.mxu0 0.0
    %1344 = vmatpush1.msra.mxu0 0.0
    %1345 = vmatprep.subr.mxu0 0.0
    %1346 = vmatpush1.msra.mxu0 0.0
    %1347 = vmatprep.subr.mxu0 0.0
    %1348 = vmatpush1.msra.mxu0 0.0
    %1349 = vmatprep.subr.mxu0 0.0
    %1350 = vmatpush1.msra.mxu0 0.0
    %1351 = vmatprep.mubr.f32.mxu0 0.0
    %1352 = vmatmul.mubr.f32.gmra.mrb[0].mxu0 %v1190
    %v1353 = vpop.f32.mrb[0].mxu0
    %v1354 = vadd.f32 0.0, %v1353
    %v1355 = vpop.f32.mrb[0].mxu0
    %1356 = vdwg.mxu0
    %v1357 = vadd.f32 %v169, %v1354
    %v1358 = vxor.u32 %v1357, 2147483648
    %v1359 = vmul.f32 %v1358, 1.442695
    %v1360 = vpow.pop %v1359
    %v1361 = vadd.f32 %v1360, 1.0
    %v1362 = vrcp.pop %v1361
    %v1363 = vmul.f32 1.0, %v1362
    %v1364 = vtanh.pop %v1357
    %v1365 = vmul.f32 %v1363, %v1105
    %1367 = vrot.lane.b32.xlu0 %v1364, 64
    %v1368 = vpop.permute.xlu0 %1367
    %v1370 = vmul.f32 %v1363, %v1368
    %1372 = vrot.lane.b32.xlu0 %v1370, 32
    %v1373 = vpop.permute.xlu0 %1372
    %v1375 = vadd.f32 %v1365, %v1373
    %v1376 = vtanh.pop %v1375
    %1378 = vrot.lane.b32.xlu0 %v1376, 64
    %v1379 = vpop.permute.xlu0 %1378
    %v1381 = vmul.f32 %v1363, %v1379
    %1383 = vrot.lane.b32.xlu0 %v1286, 32
    %v1384 = vpop.permute.xlu0 %1383
    %v1385 = vsel %vm57, %v1384, 0
    %1387 = vmatprep.subr.mxu0 0.0
    %1388 = vmatpush1.msra.mxu0 %v192
    %1389 = vmatprep.subr.mxu0 0.0
    %1390 = vmatpush1.msra.mxu0 %v193
    %1391 = vmatprep.subr.mxu0 0.0
    %1392 = vmatpush1.msra.mxu0 %v194
    %1393 = vmatprep.subr.mxu0 0.0
    %1394 = vmatpush1.msra.mxu0 %v195
    %1395 = vmatprep.subr.mxu0 0.0
    %1396 = vmatpush1.msra.mxu0 0.0
    %1397 = vmatprep.subr.mxu0 0.0
    %1398 = vmatpush1.msra.mxu0 0.0
    %1399 = vmatprep.subr.mxu0 0.0
    %1400 = vmatpush1.msra.mxu0 0.0
    %1401 = vmatprep.subr.mxu0 0.0
    %1402 = vmatpush1.msra.mxu0 0.0
    %1403 = vmatprep.subr.mxu0 0.0
    %1404 = vmatpush1.msra.mxu0 0.0
    %1405 = vmatprep.subr.mxu0 0.0
    %1406 = vmatpush1.msra.mxu0 0.0
    %1407 = vmatprep.subr.mxu0 0.0
    %1408 = vmatpush1.msra.mxu0 0.0
    %1409 = vmatprep.subr.mxu0 0.0
    %1410 = vmatpush1.msra.mxu0 0.0
    %1411 = vmatprep.subr.mxu0 0.0
    %1412 = vmatpush1.msra.mxu0 0.0
    %1413 = vmatprep.subr.mxu0 0.0
    %1414 = vmatpush1.msra.mxu0 0.0
    %1415 = vmatprep.subr.mxu0 0.0
    %1416 = vmatpush1.msra.mxu0 0.0
    %1417 = vmatprep.subr.mxu0 0.0
    %1418 = vmatpush1.msra.mxu0 0.0
    %1419 = vmatprep.subr.mxu0 0.0
    %1420 = vmatpush1.msra.mxu0 0.0
    %1421 = vmatprep.subr.mxu0 0.0
    %1422 = vmatpush1.msra.mxu0 0.0
    %1423 = vmatprep.subr.mxu0 0.0
    %1424 = vmatpush1.msra.mxu0 0.0
    %1425 = vmatprep.subr.mxu0 0.0
    %1426 = vmatpush1.msra.mxu0 0.0
    %1427 = vmatprep.subr.mxu0 0.0
    %1428 = vmatpush1.msra.mxu0 0.0
    %1429 = vmatprep.subr.mxu0 0.0
    %1430 = vmatpush1.msra.mxu0 0.0
    %1431 = vmatprep.subr.mxu0 0.0
    %1432 = vmatpush1.msra.mxu0 0.0
    %1433 = vmatprep.subr.mxu0 0.0
    %1434 = vmatpush1.msra.mxu0 0.0
    %1435 = vmatprep.subr.mxu0 0.0
    %1436 = vmatpush1.msra.mxu0 0.0
    %1437 = vmatprep.subr.mxu0 0.0
    %1438 = vmatpush1.msra.mxu0 0.0
    %1439 = vmatprep.subr.mxu0 0.0
    %1440 = vmatpush1.msra.mxu0 0.0
    %1441 = vmatprep.subr.mxu0 0.0
    %1442 = vmatpush1.msra.mxu0 0.0
    %1443 = vmatprep.subr.mxu0 0.0
    %1444 = vmatpush1.msra.mxu0 0.0
    %1445 = vmatprep.subr.mxu0 0.0
    %1446 = vmatpush1.msra.mxu0 0.0
    %1447 = vmatprep.subr.mxu0 0.0
    %1448 = vmatpush1.msra.mxu0 0.0
    %1449 = vmatprep.subr.mxu0 0.0
    %1450 = vmatpush1.msra.mxu0 0.0
    %1451 = vmatprep.mubr.f32.mxu0 0.0
    %1452 = vmatmul.mubr.f32.gmra.mrb[0].mxu0 %v1385
    %v1453 = vpop.f32.mrb[0].mxu0
    %v1454 = vadd.f32 0.0, %v1453
    %v1455 = vpop.f32.mrb[0].mxu0
    %1456 = vdwg.mxu0
    %1458 = vrot.lane.b32.xlu0 %v1381, 32
    %v1459 = vpop.permute.xlu0 %1458
    %v1460 = vsel %vm57, %v1459, 0
    %1462 = vmatprep.subr.mxu0 0.0
    %1463 = vmatpush1.msra.mxu0 %v197
    %1464 = vmatprep.subr.mxu0 0.0
    %1465 = vmatpush1.msra.mxu0 %v198
    %1466 = vmatprep.subr.mxu0 0.0
    %1467 = vmatpush1.msra.mxu0 %v199
    %1468 = vmatprep.subr.mxu0 0.0
    %1469 = vmatpush1.msra.mxu0 %v200
    %1470 = vmatprep.subr.mxu0 0.0
    %1471 = vmatpush1.msra.mxu0 0.0
    %1472 = vmatprep.subr.mxu0 0.0
    %1473 = vmatpush1.msra.mxu0 0.0
    %1474 = vmatprep.subr.mxu0 0.0
    %1475 = vmatpush1.msra.mxu0 0.0
    %1476 = vmatprep.subr.mxu0 0.0
    %1477 = vmatpush1.msra.mxu0 0.0
    %1478 = vmatprep.subr.mxu0 0.0
    %1479 = vmatpush1.msra.mxu0 0.0
    %1480 = vmatprep.subr.mxu0 0.0
    %1481 = vmatpush1.msra.mxu0 0.0
    %1482 = vmatprep.subr.mxu0 0.0
    %1483 = vmatpush1.msra.mxu0 0.0
    %1484 = vmatprep.subr.mxu0 0.0
    %1485 = vmatpush1.msra.mxu0 0.0
    %1486 = vmatprep.subr.mxu0 0.0
    %1487 = vmatpush1.msra.mxu0 0.0
    %1488 = vmatprep.subr.mxu0 0.0
    %1489 = vmatpush1.msra.mxu0 0.0
    %1490 = vmatprep.subr.mxu0 0.0
    %1491 = vmatpush1.msra.mxu0 0.0
    %1492 = vmatprep.subr.mxu0 0.0
    %1493 = vmatpush1.msra.mxu0 0.0
    %1494 = vmatprep.subr.mxu0 0.0
    %1495 = vmatpush1.msra.mxu0 0.0
    %1496 = vmatprep.subr.mxu0 0.0
    %1497 = vmatpush1.msra.mxu0 0.0
    %1498 = vmatprep.subr.mxu0 0.0
    %1499 = vmatpush1.msra.mxu0 0.0
    %1500 = vmatprep.subr.mxu0 0.0
    %1501 = vmatpush1.msra.mxu0 0.0
    %1502 = vmatprep.subr.mxu0 0.0
    %1503 = vmatpush1.msra.mxu0 0.0
    %1504 = vmatprep.subr.mxu0 0.0
    %1505 = vmatpush1.msra.mxu0 0.0
    %1506 = vmatprep.subr.mxu0 0.0
    %1507 = vmatpush1.msra.mxu0 0.0
    %1508 = vmatprep.subr.mxu0 0.0
    %1509 = vmatpush1.msra.mxu0 0.0
    %1510 = vmatprep.subr.mxu0 0.0
    %1511 = vmatpush1.msra.mxu0 0.0
    %1512 = vmatprep.subr.mxu0 0.0
    %1513 = vmatpush1.msra.mxu0 0.0
    %1514 = vmatprep.subr.mxu0 0.0
    %1515 = vmatpush1.msra.mxu0 0.0
    %1516 = vmatprep.subr.mxu0 0.0
    %1517 = vmatpush1.msra.mxu0 0.0
    %1518 = vmatprep.subr.mxu0 0.0
    %1519 = vmatpush1.msra.mxu0 0.0
    %1520 = vmatprep.subr.mxu0 0.0
    %1521 = vmatpush1.msra.mxu0 0.0
    %1522 = vmatprep.subr.mxu0 0.0
    %1523 = vmatpush1.msra.mxu0 0.0
    %1524 = vmatprep.subr.mxu0 0.0
    %1525 = vmatpush1.msra.mxu0 0.0
    %1526 = vmatprep.mubr.f32.mxu0 0.0
    %1527 = vmatmul.mubr.f32.gmra.mrb[0].mxu0 %v1460
    %v1528 = vpop.f32.mrb[0].mxu0
    %v1529 = vadd.f32 %v1454, %v1528
    %v1530 = vpop.f32.mrb[0].mxu0
    %1531 = vdwg.mxu0
    %v1532 = vadd.f32 %v1529, %v450
    %v1533 = vxor.u32 %v1532, 2147483648
    %v1534 = vmul.f32 %v1533, 1.442695
    %v1535 = vpow.pop %v1534
    %v1536 = vadd.f32 %v1535, 1.0
    %v1537 = vrcp.pop %v1536
    %v1538 = vmul.f32 1.0, %v1537
    %v1539 = vtanh.pop %v1532
    %v1540 = vmul.f32 %v1538, %v1280
    %1542 = vrot.lane.b32.xlu0 %v1539, 64
    %v1543 = vpop.permute.xlu0 %1542
    %v1545 = vmul.f32 %v1538, %v1543
    %1547 = vrot.lane.b32.xlu0 %v1545, 32
    %v1548 = vpop.permute.xlu0 %1547
    %v1550 = vadd.f32 %v1540, %v1548
    %v1551 = vtanh.pop %v1550
    %1553 = vrot.lane.b32.xlu0 %v1551, 64
    %v1554 = vpop.permute.xlu0 %1553
    %v1556 = vmul.f32 %v1538, %v1554
    %1557 = vmatprep.subr.mxu0 0.0
    %1558 = vmatpush1.msra.mxu0 %v187
    %1559 = vmatprep.subr.mxu0 0.0
    %1560 = vmatpush1.msra.mxu0 %v188
    %1561 = vmatprep.subr.mxu0 0.0
    %1562 = vmatpush1.msra.mxu0 %v189
    %1563 = vmatprep.subr.mxu0 0.0
    %1564 = vmatpush1.msra.mxu0 %v190
    %1565 = vmatprep.subr.mxu0 0.0
    %1566 = vmatpush1.msra.mxu0 0.0
    %1567 = vmatprep.subr.mxu0 0.0
    %1568 = vmatpush1.msra.mxu0 0.0
    %1569 = vmatprep.subr.mxu0 0.0
    %1570 = vmatpush1.msra.mxu0 0.0
    %1571 = vmatprep.subr.mxu0 0.0
    %1572 = vmatpush1.msra.mxu0 0.0
    %1573 = vmatprep.subr.mxu0 0.0
    %1574 = vmatpush1.msra.mxu0 0.0
    %1575 = vmatprep.subr.mxu0 0.0
    %1576 = vmatpush1.msra.mxu0 0.0
    %1577 = vmatprep.subr.mxu0 0.0
    %1578 = vmatpush1.msra.mxu0 0.0
    %1579 = vmatprep.subr.mxu0 0.0
    %1580 = vmatpush1.msra.mxu0 0.0
    %1581 = vmatprep.subr.mxu0 0.0
    %1582 = vmatpush1.msra.mxu0 0.0
    %1583 = vmatprep.subr.mxu0 0.0
    %1584 = vmatpush1.msra.mxu0 0.0
    %1585 = vmatprep.subr.mxu0 0.0
    %1586 = vmatpush1.msra.mxu0 0.0
    %1587 = vmatprep.subr.mxu0 0.0
    %1588 = vmatpush1.msra.mxu0 0.0
    %1589 = vmatprep.subr.mxu0 0.0
    %1590 = vmatpush1.msra.mxu0 0.0
    %1591 = vmatprep.subr.mxu0 0.0
    %1592 = vmatpush1.msra.mxu0 0.0
    %1593 = vmatprep.subr.mxu0 0.0
    %1594 = vmatpush1.msra.mxu0 0.0
    %1595 = vmatprep.subr.mxu0 0.0
    %1596 = vmatpush1.msra.mxu0 0.0
    %1597 = vmatprep.subr.mxu0 0.0
    %1598 = vmatpush1.msra.mxu0 0.0
    %1599 = vmatprep.subr.mxu0 0.0
    %1600 = vmatpush1.msra.mxu0 0.0
    %1601 = vmatprep.subr.mxu0 0.0
    %1602 = vmatpush1.msra.mxu0 0.0
    %1603 = vmatprep.subr.mxu0 0.0
    %1604 = vmatpush1.msra.mxu0 0.0
    %1605 = vmatprep.subr.mxu0 0.0
    %1606 = vmatpush1.msra.mxu0 0.0
    %1607 = vmatprep.subr.mxu0 0.0
    %1608 = vmatpush1.msra.mxu0 0.0
    %1609 = vmatprep.subr.mxu0 0.0
    %1610 = vmatpush1.msra.mxu0 0.0
    %1611 = vmatprep.subr.mxu0 0.0
    %1612 = vmatpush1.msra.mxu0 0.0
    %1613 = vmatprep.subr.mxu0 0.0
    %1614 = vmatpush1.msra.mxu0 0.0
    %1615 = vmatprep.subr.mxu0 0.0
    %1616 = vmatpush1.msra.mxu0 0.0
    %1617 = vmatprep.subr.mxu0 0.0
    %1618 = vmatpush1.msra.mxu0 0.0
    %1619 = vmatprep.subr.mxu0 0.0
    %1620 = vmatpush1.msra.mxu0 0.0
    %1621 = vmatprep.mubr.f32.mxu0 0.0
    %1622 = vmatmul.mubr.f32.gmra.mrb[0].mxu0 %v1460
    %v1623 = vpop.f32.mrb[0].mxu0
    %v1624 = vadd.f32 0.0, %v1623
    %v1625 = vpop.f32.mrb[0].mxu0
    %1626 = vdwg.mxu0
    %v1627 = vadd.f32 %v174, %v1624
    %v1628 = vxor.u32 %v1627, 2147483648
    %v1629 = vmul.f32 %v1628, 1.442695
    %v1630 = vpow.pop %v1629
    %v1631 = vadd.f32 %v1630, 1.0
    %v1632 = vrcp.pop %v1631
    %v1633 = vmul.f32 1.0, %v1632
    %v1634 = vtanh.pop %v1627
    %v1635 = vmul.f32 %v1633, %v1375
    %1637 = vrot.lane.b32.xlu0 %v1634, 64
    %v1638 = vpop.permute.xlu0 %1637
    %v1640 = vmul.f32 %v1633, %v1638
    %1642 = vrot.lane.b32.xlu0 %v1640, 32
    %v1643 = vpop.permute.xlu0 %1642
    %v1645 = vadd.f32 %v1635, %v1643
    %v1646 = vtanh.pop %v1645
    %1648 = vrot.lane.b32.xlu0 %v1646, 64
    %v1649 = vpop.permute.xlu0 %1648
    %v1651 = vmul.f32 %v1633, %v1649
    %1653 = vrot.lane.b32.xlu0 %v1556, 32
    %v1654 = vpop.permute.xlu0 %1653
    %v1655 = vsel %vm57, %v1654, 0
    %1657 = vmatprep.subr.mxu0 0.0
    %1658 = vmatpush1.msra.mxu0 %v192
    %1659 = vmatprep.subr.mxu0 0.0
    %1660 = vmatpush1.msra.mxu0 %v193
    %1661 = vmatprep.subr.mxu0 0.0
    %1662 = vmatpush1.msra.mxu0 %v194
    %1663 = vmatprep.subr.mxu0 0.0
    %1664 = vmatpush1.msra.mxu0 %v195
    %1665 = vmatprep.subr.mxu0 0.0
    %1666 = vmatpush1.msra.mxu0 0.0
    %1667 = vmatprep.subr.mxu0 0.0
    %1668 = vmatpush1.msra.mxu0 0.0
    %1669 = vmatprep.subr.mxu0 0.0
    %1670 = vmatpush1.msra.mxu0 0.0
    %1671 = vmatprep.subr.mxu0 0.0
    %1672 = vmatpush1.msra.mxu0 0.0
    %1673 = vmatprep.subr.mxu0 0.0
    %1674 = vmatpush1.msra.mxu0 0.0
    %1675 = vmatprep.subr.mxu0 0.0
    %1676 = vmatpush1.msra.mxu0 0.0
    %1677 = vmatprep.subr.mxu0 0.0
    %1678 = vmatpush1.msra.mxu0 0.0
    %1679 = vmatprep.subr.mxu0 0.0
    %1680 = vmatpush1.msra.mxu0 0.0
    %1681 = vmatprep.subr.mxu0 0.0
    %1682 = vmatpush1.msra.mxu0 0.0
    %1683 = vmatprep.subr.mxu0 0.0
    %1684 = vmatpush1.msra.mxu0 0.0
    %1685 = vmatprep.subr.mxu0 0.0
    %1686 = vmatpush1.msra.mxu0 0.0
    %1687 = vmatprep.subr.mxu0 0.0
    %1688 = vmatpush1.msra.mxu0 0.0
    %1689 = vmatprep.subr.mxu0 0.0
    %1690 = vmatpush1.msra.mxu0 0.0
    %1691 = vmatprep.subr.mxu0 0.0
    %1692 = vmatpush1.msra.mxu0 0.0
    %1693 = vmatprep.subr.mxu0 0.0
    %1694 = vmatpush1.msra.mxu0 0.0
    %1695 = vmatprep.subr.mxu0 0.0
    %1696 = vmatpush1.msra.mxu0 0.0
    %1697 = vmatprep.subr.mxu0 0.0
    %1698 = vmatpush1.msra.mxu0 0.0
    %1699 = vmatprep.subr.mxu0 0.0
    %1700 = vmatpush1.msra.mxu0 0.0
    %1701 = vmatprep.subr.mxu0 0.0
    %1702 = vmatpush1.msra.mxu0 0.0
    %1703 = vmatprep.subr.mxu0 0.0
    %1704 = vmatpush1.msra.mxu0 0.0
    %1705 = vmatprep.subr.mxu0 0.0
    %1706 = vmatpush1.msra.mxu0 0.0
    %1707 = vmatprep.subr.mxu0 0.0
    %1708 = vmatpush1.msra.mxu0 0.0
    %1709 = vmatprep.subr.mxu0 0.0
    %1710 = vmatpush1.msra.mxu0 0.0
    %1711 = vmatprep.subr.mxu0 0.0
    %1712 = vmatpush1.msra.mxu0 0.0
    %1713 = vmatprep.subr.mxu0 0.0
    %1714 = vmatpush1.msra.mxu0 0.0
    %1715 = vmatprep.subr.mxu0 0.0
    %1716 = vmatpush1.msra.mxu0 0.0
    %1717 = vmatprep.subr.mxu0 0.0
    %1718 = vmatpush1.msra.mxu0 0.0
    %1719 = vmatprep.subr.mxu0 0.0
    %1720 = vmatpush1.msra.mxu0 0.0
    %1721 = vmatprep.mubr.f32.mxu0 0.0
    %1722 = vmatmul.mubr.f32.gmra.mrb[0].mxu0 %v1655
    %v1723 = vpop.f32.mrb[0].mxu0
    %v1724 = vadd.f32 0.0, %v1723
    %v1725 = vpop.f32.mrb[0].mxu0
    %1726 = vdwg.mxu0
    %1728 = vrot.lane.b32.xlu0 %v1651, 32
    %v1729 = vpop.permute.xlu0 %1728
    %v1730 = vsel %vm57, %v1729, 0
    %1732 = vmatprep.subr.mxu0 0.0
    %1733 = vmatpush1.msra.mxu0 %v197
    %1734 = vmatprep.subr.mxu0 0.0
    %1735 = vmatpush1.msra.mxu0 %v198
    %1736 = vmatprep.subr.mxu0 0.0
    %1737 = vmatpush1.msra.mxu0 %v199
    %1738 = vmatprep.subr.mxu0 0.0
    %1739 = vmatpush1.msra.mxu0 %v200
    %1740 = vmatprep.subr.mxu0 0.0
    %1741 = vmatpush1.msra.mxu0 0.0
    %1742 = vmatprep.subr.mxu0 0.0
    %1743 = vmatpush1.msra.mxu0 0.0
    %1744 = vmatprep.subr.mxu0 0.0
    %1745 = vmatpush1.msra.mxu0 0.0
    %1746 = vmatprep.subr.mxu0 0.0
    %1747 = vmatpush1.msra.mxu0 0.0
    %1748 = vmatprep.subr.mxu0 0.0
    %1749 = vmatpush1.msra.mxu0 0.0
    %1750 = vmatprep.subr.mxu0 0.0
    %1751 = vmatpush1.msra.mxu0 0.0
    %1752 = vmatprep.subr.mxu0 0.0
    %1753 = vmatpush1.msra.mxu0 0.0
    %1754 = vmatprep.subr.mxu0 0.0
    %1755 = vmatpush1.msra.mxu0 0.0
    %1756 = vmatprep.subr.mxu0 0.0
    %1757 = vmatpush1.msra.mxu0 0.0
    %1758 = vmatprep.subr.mxu0 0.0
    %1759 = vmatpush1.msra.mxu0 0.0
    %1760 = vmatprep.subr.mxu0 0.0
    %1761 = vmatpush1.msra.mxu0 0.0
    %1762 = vmatprep.subr.mxu0 0.0
    %1763 = vmatpush1.msra.mxu0 0.0
    %1764 = vmatprep.subr.mxu0 0.0
    %1765 = vmatpush1.msra.mxu0 0.0
    %1766 = vmatprep.subr.mxu0 0.0
    %1767 = vmatpush1.msra.mxu0 0.0
    %1768 = vmatprep.subr.mxu0 0.0
    %1769 = vmatpush1.msra.mxu0 0.0
    %1770 = vmatprep.subr.mxu0 0.0
    %1771 = vmatpush1.msra.mxu0 0.0
    %1772 = vmatprep.subr.mxu0 0.0
    %1773 = vmatpush1.msra.mxu0 0.0
    %1774 = vmatprep.subr.mxu0 0.0
    %1775 = vmatpush1.msra.mxu0 0.0
    %1776 = vmatprep.subr.mxu0 0.0
    %1777 = vmatpush1.msra.mxu0 0.0
    %1778 = vmatprep.subr.mxu0 0.0
    %1779 = vmatpush1.msra.mxu0 0.0
    %1780 = vmatprep.subr.mxu0 0.0
    %1781 = vmatpush1.msra.mxu0 0.0
    %1782 = vmatprep.subr.mxu0 0.0
    %1783 = vmatpush1.msra.mxu0 0.0
    %1784 = vmatprep.subr.mxu0 0.0
    %1785 = vmatpush1.msra.mxu0 0.0
    %1786 = vmatprep.subr.mxu0 0.0
    %1787 = vmatpush1.msra.mxu0 0.0
    %1788 = vmatprep.subr.mxu0 0.0
    %1789 = vmatpush1.msra.mxu0 0.0
    %1790 = vmatprep.subr.mxu0 0.0
    %1791 = vmatpush1.msra.mxu0 0.0
    %1792 = vmatprep.subr.mxu0 0.0
    %1793 = vmatpush1.msra.mxu0 0.0
    %1794 = vmatprep.subr.mxu0 0.0
    %1795 = vmatpush1.msra.mxu0 0.0
    %1796 = vmatprep.mubr.f32.mxu0 0.0
    %1797 = vmatmul.mubr.f32.gmra.mrb[0].mxu0 %v1730
    %v1798 = vpop.f32.mrb[0].mxu0
    %v1799 = vadd.f32 %v1724, %v1798
    %v1800 = vpop.f32.mrb[0].mxu0
    %1801 = vdwg.mxu0
    %v1802 = vadd.f32 %v1799, %v450
    %v1803 = vxor.u32 %v1802, 2147483648
    %v1804 = vmul.f32 %v1803, 1.442695
    %v1805 = vpow.pop %v1804
    %v1806 = vadd.f32 %v1805, 1.0
    %v1807 = vrcp.pop %v1806
    %v1808 = vmul.f32 1.0, %v1807
    %v1809 = vtanh.pop %v1802
    %v1810 = vmul.f32 %v1808, %v1550
    %1812 = vrot.lane.b32.xlu0 %v1809, 64
    %v1813 = vpop.permute.xlu0 %1812
    %v1815 = vmul.f32 %v1808, %v1813
    %1817 = vrot.lane.b32.xlu0 %v1815, 32
    %v1818 = vpop.permute.xlu0 %1817
    %v1820 = vadd.f32 %v1810, %v1818
    %v1821 = vtanh.pop %v1820
    %1823 = vrot.lane.b32.xlu0 %v1821, 64
    %v1824 = vpop.permute.xlu0 %1823
    %v1826 = vmul.f32 %v1808, %v1824
    %1827 = vmatprep.subr.mxu0 0.0
    %1828 = vmatpush1.msra.mxu0 %v187
    %1829 = vmatprep.subr.mxu0 0.0
    %1830 = vmatpush1.msra.mxu0 %v188
    %1831 = vmatprep.subr.mxu0 0.0
    %1832 = vmatpush1.msra.mxu0 %v189
    %1833 = vmatprep.subr.mxu0 0.0
    %1834 = vmatpush1.msra.mxu0 %v190
    %1835 = vmatprep.subr.mxu0 0.0
    %1836 = vmatpush1.msra.mxu0 0.0
    %1837 = vmatprep.subr.mxu0 0.0
    %1838 = vmatpush1.msra.mxu0 0.0
    %1839 = vmatprep.subr.mxu0 0.0
    %1840 = vmatpush1.msra.mxu0 0.0
    %1841 = vmatprep.subr.mxu0 0.0
    %1842 = vmatpush1.msra.mxu0 0.0
    %1843 = vmatprep.subr.mxu0 0.0
    %1844 = vmatpush1.msra.mxu0 0.0
    %1845 = vmatprep.subr.mxu0 0.0
    %1846 = vmatpush1.msra.mxu0 0.0
    %1847 = vmatprep.subr.mxu0 0.0
    %1848 = vmatpush1.msra.mxu0 0.0
    %1849 = vmatprep.subr.mxu0 0.0
    %1850 = vmatpush1.msra.mxu0 0.0
    %1851 = vmatprep.subr.mxu0 0.0
    %1852 = vmatpush1.msra.mxu0 0.0
    %1853 = vmatprep.subr.mxu0 0.0
    %1854 = vmatpush1.msra.mxu0 0.0
    %1855 = vmatprep.subr.mxu0 0.0
    %1856 = vmatpush1.msra.mxu0 0.0
    %1857 = vmatprep.subr.mxu0 0.0
    %1858 = vmatpush1.msra.mxu0 0.0
    %1859 = vmatprep.subr.mxu0 0.0
    %1860 = vmatpush1.msra.mxu0 0.0
    %1861 = vmatprep.subr.mxu0 0.0
    %1862 = vmatpush1.msra.mxu0 0.0
    %1863 = vmatprep.subr.mxu0 0.0
    %1864 = vmatpush1.msra.mxu0 0.0
    %1865 = vmatprep.subr.mxu0 0.0
    %1866 = vmatpush1.msra.mxu0 0.0
    %1867 = vmatprep.subr.mxu0 0.0
    %1868 = vmatpush1.msra.mxu0 0.0
    %1869 = vmatprep.subr.mxu0 0.0
    %1870 = vmatpush1.msra.mxu0 0.0
    %1871 = vmatprep.subr.mxu0 0.0
    %1872 = vmatpush1.msra.mxu0 0.0
    %1873 = vmatprep.subr.mxu0 0.0
    %1874 = vmatpush1.msra.mxu0 0.0
    %1875 = vmatprep.subr.mxu0 0.0
    %1876 = vmatpush1.msra.mxu0 0.0
    %1877 = vmatprep.subr.mxu0 0.0
    %1878 = vmatpush1.msra.mxu0 0.0
    %1879 = vmatprep.subr.mxu0 0.0
    %1880 = vmatpush1.msra.mxu0 0.0
    %1881 = vmatprep.subr.mxu0 0.0
    %1882 = vmatpush1.msra.mxu0 0.0
    %1883 = vmatprep.subr.mxu0 0.0
    %1884 = vmatpush1.msra.mxu0 0.0
    %1885 = vmatprep.subr.mxu0 0.0
    %1886 = vmatpush1.msra.mxu0 0.0
    %1887 = vmatprep.subr.mxu0 0.0
    %1888 = vmatpush1.msra.mxu0 0.0
    %1889 = vmatprep.subr.mxu0 0.0
    %1890 = vmatpush1.msra.mxu0 0.0
    %1891 = vmatprep.mubr.f32.mxu0 0.0
    %1892 = vmatmul.mubr.f32.gmra.mrb[0].mxu0 %v1730
    %v1893 = vpop.f32.mrb[0].mxu0
    %v1894 = vadd.f32 0.0, %v1893
    %v1895 = vpop.f32.mrb[0].mxu0
    %1896 = vdwg.mxu0
    %v1897 = vadd.f32 %v179, %v1894
    %v1898 = vxor.u32 %v1897, 2147483648
    %v1899 = vmul.f32 %v1898, 1.442695
    %v1900 = vpow.pop %v1899
    %v1901 = vadd.f32 %v1900, 1.0
    %v1902 = vrcp.pop %v1901
    %v1903 = vmul.f32 1.0, %v1902
    %v1904 = vtanh.pop %v1897
    %v1905 = vmul.f32 %v1903, %v1645
    %1907 = vrot.lane.b32.xlu0 %v1904, 64
    %v1908 = vpop.permute.xlu0 %1907
    %v1910 = vmul.f32 %v1903, %v1908
    %1912 = vrot.lane.b32.xlu0 %v1910, 32
    %v1913 = vpop.permute.xlu0 %1912
    %v1915 = vadd.f32 %v1905, %v1913
    %v1916 = vtanh.pop %v1915
    %1918 = vrot.lane.b32.xlu0 %v1916, 64
    %v1919 = vpop.permute.xlu0 %1918
    %v1921 = vmul.f32 %v1903, %v1919
    %1923 = vrot.lane.b32.xlu0 %v1826, 32
    %v1924 = vpop.permute.xlu0 %1923
    %v1925 = vsel %vm57, %v1924, 0
    %1927 = vmatprep.subr.mxu0 0.0
    %1928 = vmatpush1.msra.mxu0 %v192
    %1929 = vmatprep.subr.mxu0 0.0
    %1930 = vmatpush1.msra.mxu0 %v193
    %1931 = vmatprep.subr.mxu0 0.0
    %1932 = vmatpush1.msra.mxu0 %v194
    %1933 = vmatprep.subr.mxu0 0.0
    %1934 = vmatpush1.msra.mxu0 %v195
    %1935 = vmatprep.subr.mxu0 0.0
    %1936 = vmatpush1.msra.mxu0 0.0
    %1937 = vmatprep.subr.mxu0 0.0
    %1938 = vmatpush1.msra.mxu0 0.0
    %1939 = vmatprep.subr.mxu0 0.0
    %1940 = vmatpush1.msra.mxu0 0.0
    %1941 = vmatprep.subr.mxu0 0.0
    %1942 = vmatpush1.msra.mxu0 0.0
    %1943 = vmatprep.subr.mxu0 0.0
    %1944 = vmatpush1.msra.mxu0 0.0
    %1945 = vmatprep.subr.mxu0 0.0
    %1946 = vmatpush1.msra.mxu0 0.0
    %1947 = vmatprep.subr.mxu0 0.0
    %1948 = vmatpush1.msra.mxu0 0.0
    %1949 = vmatprep.subr.mxu0 0.0
    %1950 = vmatpush1.msra.mxu0 0.0
    %1951 = vmatprep.subr.mxu0 0.0
    %1952 = vmatpush1.msra.mxu0 0.0
    %1953 = vmatprep.subr.mxu0 0.0
    %1954 = vmatpush1.msra.mxu0 0.0
    %1955 = vmatprep.subr.mxu0 0.0
    %1956 = vmatpush1.msra.mxu0 0.0
    %1957 = vmatprep.subr.mxu0 0.0
    %1958 = vmatpush1.msra.mxu0 0.0
    %1959 = vmatprep.subr.mxu0 0.0
    %1960 = vmatpush1.msra.mxu0 0.0
    %1961 = vmatprep.subr.mxu0 0.0
    %1962 = vmatpush1.msra.mxu0 0.0
    %1963 = vmatprep.subr.mxu0 0.0
    %1964 = vmatpush1.msra.mxu0 0.0
    %1965 = vmatprep.subr.mxu0 0.0
    %1966 = vmatpush1.msra.mxu0 0.0
    %1967 = vmatprep.subr.mxu0 0.0
    %1968 = vmatpush1.msra.mxu0 0.0
    %1969 = vmatprep.subr.mxu0 0.0
    %1970 = vmatpush1.msra.mxu0 0.0
    %1971 = vmatprep.subr.mxu0 0.0
    %1972 = vmatpush1.msra.mxu0 0.0
    %1973 = vmatprep.subr.mxu0 0.0
    %1974 = vmatpush1.msra.mxu0 0.0
    %1975 = vmatprep.subr.mxu0 0.0
    %1976 = vmatpush1.msra.mxu0 0.0
    %1977 = vmatprep.subr.mxu0 0.0
    %1978 = vmatpush1.msra.mxu0 0.0
    %1979 = vmatprep.subr.mxu0 0.0
    %1980 = vmatpush1.msra.mxu0 0.0
    %1981 = vmatprep.subr.mxu0 0.0
    %1982 = vmatpush1.msra.mxu0 0.0
    %1983 = vmatprep.subr.mxu0 0.0
    %1984 = vmatpush1.msra.mxu0 0.0
    %1985 = vmatprep.subr.mxu0 0.0
    %1986 = vmatpush1.msra.mxu0 0.0
    %1987 = vmatprep.subr.mxu0 0.0
    %1988 = vmatpush1.msra.mxu0 0.0
    %1989 = vmatprep.subr.mxu0 0.0
    %1990 = vmatpush1.msra.mxu0 0.0
    %1991 = vmatprep.mubr.f32.mxu0 0.0
    %1992 = vmatmul.mubr.f32.gmra.mrb[0].mxu0 %v1925
    %v1993 = vpop.f32.mrb[0].mxu0
    %v1994 = vadd.f32 0.0, %v1993
    %v1995 = vpop.f32.mrb[0].mxu0
    %1996 = vdwg.mxu0
    %1998 = vrot.lane.b32.xlu0 %v1921, 32
    %v1999 = vpop.permute.xlu0 %1998
    %v2000 = vsel %vm57, %v1999, 0
    %2002 = vmatprep.subr.mxu0 0.0
    %2003 = vmatpush1.msra.mxu0 %v197
    %2004 = vmatprep.subr.mxu0 0.0
    %2005 = vmatpush1.msra.mxu0 %v198
    %2006 = vmatprep.subr.mxu0 0.0
    %2007 = vmatpush1.msra.mxu0 %v199
    %2008 = vmatprep.subr.mxu0 0.0
    %2009 = vmatpush1.msra.mxu0 %v200
    %2010 = vmatprep.subr.mxu0 0.0
    %2011 = vmatpush1.msra.mxu0 0.0
    %2012 = vmatprep.subr.mxu0 0.0
    %2013 = vmatpush1.msra.mxu0 0.0
    %2014 = vmatprep.subr.mxu0 0.0
    %2015 = vmatpush1.msra.mxu0 0.0
    %2016 = vmatprep.subr.mxu0 0.0
    %2017 = vmatpush1.msra.mxu0 0.0
    %2018 = vmatprep.subr.mxu0 0.0
    %2019 = vmatpush1.msra.mxu0 0.0
    %2020 = vmatprep.subr.mxu0 0.0
    %2021 = vmatpush1.msra.mxu0 0.0
    %2022 = vmatprep.subr.mxu0 0.0
    %2023 = vmatpush1.msra.mxu0 0.0
    %2024 = vmatprep.subr.mxu0 0.0
    %2025 = vmatpush1.msra.mxu0 0.0
    %2026 = vmatprep.subr.mxu0 0.0
    %2027 = vmatpush1.msra.mxu0 0.0
    %2028 = vmatprep.subr.mxu0 0.0
    %2029 = vmatpush1.msra.mxu0 0.0
    %2030 = vmatprep.subr.mxu0 0.0
    %2031 = vmatpush1.msra.mxu0 0.0
    %2032 = vmatprep.subr.mxu0 0.0
    %2033 = vmatpush1.msra.mxu0 0.0
    %2034 = vmatprep.subr.mxu0 0.0
    %2035 = vmatpush1.msra.mxu0 0.0
    %2036 = vmatprep.subr.mxu0 0.0
    %2037 = vmatpush1.msra.mxu0 0.0
    %2038 = vmatprep.subr.mxu0 0.0
    %2039 = vmatpush1.msra.mxu0 0.0
    %2040 = vmatprep.subr.mxu0 0.0
    %2041 = vmatpush1.msra.mxu0 0.0
    %2042 = vmatprep.subr.mxu0 0.0
    %2043 = vmatpush1.msra.mxu0 0.0
    %2044 = vmatprep.subr.mxu0 0.0
    %2045 = vmatpush1.msra.mxu0 0.0
    %2046 = vmatprep.subr.mxu0 0.0
    %2047 = vmatpush1.msra.mxu0 0.0
    %2048 = vmatprep.subr.mxu0 0.0
    %2049 = vmatpush1.msra.mxu0 0.0
    %2050 = vmatprep.subr.mxu0 0.0
    %2051 = vmatpush1.msra.mxu0 0.0
    %2052 = vmatprep.subr.mxu0 0.0
    %2053 = vmatpush1.msra.mxu0 0.0
    %2054 = vmatprep.subr.mxu0 0.0
    %2055 = vmatpush1.msra.mxu0 0.0
    %2056 = vmatprep.subr.mxu0 0.0
    %2057 = vmatpush1.msra.mxu0 0.0
    %2058 = vmatprep.subr.mxu0 0.0
    %2059 = vmatpush1.msra.mxu0 0.0
    %2060 = vmatprep.subr.mxu0 0.0
    %2061 = vmatpush1.msra.mxu0 0.0
    %2062 = vmatprep.subr.mxu0 0.0
    %2063 = vmatpush1.msra.mxu0 0.0
    %2064 = vmatprep.subr.mxu0 0.0
    %2065 = vmatpush1.msra.mxu0 0.0
    %2066 = vmatprep.mubr.f32.mxu0 0.0
    %2067 = vmatmul.mubr.f32.gmra.mrb[0].mxu0 %v2000
    %v2068 = vpop.f32.mrb[0].mxu0
    %v2069 = vadd.f32 %v1994, %v2068
    %v2070 = vpop.f32.mrb[0].mxu0
    %2071 = vdwg.mxu0
    %v2072 = vadd.f32 %v2069, %v450
    %v2073 = vxor.u32 %v2072, 2147483648
    %v2074 = vmul.f32 %v2073, 1.442695
    %v2075 = vpow.pop %v2074
    %v2076 = vadd.f32 %v2075, 1.0
    %v2077 = vrcp.pop %v2076
    %v2078 = vmul.f32 1.0, %v2077
    %v2079 = vtanh.pop %v2072
    %v2080 = vmul.f32 %v2078, %v1820
    %2082 = vrot.lane.b32.xlu0 %v2079, 64
    %v2083 = vpop.permute.xlu0 %2082
    %v2085 = vmul.f32 %v2078, %v2083
    %2087 = vrot.lane.b32.xlu0 %v2085, 32
    %v2088 = vpop.permute.xlu0 %2087
    %v2090 = vadd.f32 %v2080, %v2088
    %v2091 = vtanh.pop %v2090
    %2093 = vrot.lane.b32.xlu0 %v2091, 64
    %v2094 = vpop.permute.xlu0 %2093
    %v2096 = vmul.f32 %v2078, %v2094
    %2097 = vmatprep.subr.mxu0 0.0
    %2098 = vmatpush1.msra.mxu0 %v187
    %2099 = vmatprep.subr.mxu0 0.0
    %2100 = vmatpush1.msra.mxu0 %v188
    %2101 = vmatprep.subr.mxu0 0.0
    %2102 = vmatpush1.msra.mxu0 %v189
    %2103 = vmatprep.subr.mxu0 0.0
    %2104 = vmatpush1.msra.mxu0 %v190
    %2105 = vmatprep.subr.mxu0 0.0
    %2106 = vmatpush1.msra.mxu0 0.0
    %2107 = vmatprep.subr.mxu0 0.0
    %2108 = vmatpush1.msra.mxu0 0.0
    %2109 = vmatprep.subr.mxu0 0.0
    %2110 = vmatpush1.msra.mxu0 0.0
    %2111 = vmatprep.subr.mxu0 0.0
    %2112 = vmatpush1.msra.mxu0 0.0
    %2113 = vmatprep.subr.mxu0 0.0
    %2114 = vmatpush1.msra.mxu0 0.0
    %2115 = vmatprep.subr.mxu0 0.0
    %2116 = vmatpush1.msra.mxu0 0.0
    %2117 = vmatprep.subr.mxu0 0.0
    %2118 = vmatpush1.msra.mxu0 0.0
    %2119 = vmatprep.subr.mxu0 0.0
    %2120 = vmatpush1.msra.mxu0 0.0
    %2121 = vmatprep.subr.mxu0 0.0
    %2122 = vmatpush1.msra.mxu0 0.0
    %2123 = vmatprep.subr.mxu0 0.0
    %2124 = vmatpush1.msra.mxu0 0.0
    %2125 = vmatprep.subr.mxu0 0.0
    %2126 = vmatpush1.msra.mxu0 0.0
    %2127 = vmatprep.subr.mxu0 0.0
    %2128 = vmatpush1.msra.mxu0 0.0
    %2129 = vmatprep.subr.mxu0 0.0
    %2130 = vmatpush1.msra.mxu0 0.0
    %2131 = vmatprep.subr.mxu0 0.0
    %2132 = vmatpush1.msra.mxu0 0.0
    %2133 = vmatprep.subr.mxu0 0.0
    %2134 = vmatpush1.msra.mxu0 0.0
    %2135 = vmatprep.subr.mxu0 0.0
    %2136 = vmatpush1.msra.mxu0 0.0
    %2137 = vmatprep.subr.mxu0 0.0
    %2138 = vmatpush1.msra.mxu0 0.0
    %2139 = vmatprep.subr.mxu0 0.0
    %2140 = vmatpush1.msra.mxu0 0.0
    %2141 = vmatprep.subr.mxu0 0.0
    %2142 = vmatpush1.msra.mxu0 0.0
    %2143 = vmatprep.subr.mxu0 0.0
    %2144 = vmatpush1.msra.mxu0 0.0
    %2145 = vmatprep.subr.mxu0 0.0
    %2146 = vmatpush1.msra.mxu0 0.0
    %2147 = vmatprep.subr.mxu0 0.0
    %2148 = vmatpush1.msra.mxu0 0.0
    %2149 = vmatprep.subr.mxu0 0.0
    %2150 = vmatpush1.msra.mxu0 0.0
    %2151 = vmatprep.subr.mxu0 0.0
    %2152 = vmatpush1.msra.mxu0 0.0
    %2153 = vmatprep.subr.mxu0 0.0
    %2154 = vmatpush1.msra.mxu0 0.0
    %2155 = vmatprep.subr.mxu0 0.0
    %2156 = vmatpush1.msra.mxu0 0.0
    %2157 = vmatprep.subr.mxu0 0.0
    %2158 = vmatpush1.msra.mxu0 0.0
    %2159 = vmatprep.subr.mxu0 0.0
    %2160 = vmatpush1.msra.mxu0 0.0
    %2161 = vmatprep.mubr.f32.mxu0 0.0
    %2162 = vmatmul.mubr.f32.gmra.mrb[0].mxu0 %v2000
    %v2163 = vpop.f32.mrb[0].mxu0
    %v2164 = vadd.f32 0.0, %v2163
    %v2165 = vpop.f32.mrb[0].mxu0
    %2166 = vdwg.mxu0
    %v2167 = vadd.f32 %v184, %v2164
    %v2168 = vxor.u32 %v2167, 2147483648
    %v2169 = vmul.f32 %v2168, 1.442695
    %v2170 = vpow.pop %v2169
    %v2171 = vadd.f32 %v2170, 1.0
    %v2172 = vrcp.pop %v2171
    %v2173 = vmul.f32 1.0, %v2172
    %v2174 = vtanh.pop %v2167
    %v2175 = vmul.f32 %v2173, %v1915
    %2177 = vrot.lane.b32.xlu0 %v2174, 64
    %v2178 = vpop.permute.xlu0 %2177
    %v2180 = vmul.f32 %v2173, %v2178
    %2182 = vrot.lane.b32.xlu0 %v2180, 32
    %v2183 = vpop.permute.xlu0 %2182
    %v2185 = vadd.f32 %v2175, %v2183
    %v2186 = vtanh.pop %v2185
    %2188 = vrot.lane.b32.xlu0 %v2186, 64
    %v2189 = vpop.permute.xlu0 %2188
    %v2191 = vmul.f32 %v2173, %v2189
    %2193 = vrot.lane.b32.xlu0 %v2096, 32
    %v2194 = vpop.permute.xlu0 %2193
    %v2195 = vsel %vm57, %v2194, 0
    %2197 = vmatprep.subr.mxu0 0.0
    %2198 = vmatpush1.msra.mxu0 %v192
    %2199 = vmatprep.subr.mxu0 0.0
    %2200 = vmatpush1.msra.mxu0 %v193
    %2201 = vmatprep.subr.mxu0 0.0
    %2202 = vmatpush1.msra.mxu0 %v194
    %2203 = vmatprep.subr.mxu0 0.0
    %2204 = vmatpush1.msra.mxu0 %v195
    %2205 = vmatprep.subr.mxu0 0.0
    %2206 = vmatpush1.msra.mxu0 0.0
    %2207 = vmatprep.subr.mxu0 0.0
    %2208 = vmatpush1.msra.mxu0 0.0
    %2209 = vmatprep.subr.mxu0 0.0
    %2210 = vmatpush1.msra.mxu0 0.0
    %2211 = vmatprep.subr.mxu0 0.0
    %2212 = vmatpush1.msra.mxu0 0.0
    %2213 = vmatprep.subr.mxu0 0.0
    %2214 = vmatpush1.msra.mxu0 0.0
    %2215 = vmatprep.subr.mxu0 0.0
    %2216 = vmatpush1.msra.mxu0 0.0
    %2217 = vmatprep.subr.mxu0 0.0
    %2218 = vmatpush1.msra.mxu0 0.0
    %2219 = vmatprep.subr.mxu0 0.0
    %2220 = vmatpush1.msra.mxu0 0.0
    %2221 = vmatprep.subr.mxu0 0.0
    %2222 = vmatpush1.msra.mxu0 0.0
    %2223 = vmatprep.subr.mxu0 0.0
    %2224 = vmatpush1.msra.mxu0 0.0
    %2225 = vmatprep.subr.mxu0 0.0
    %2226 = vmatpush1.msra.mxu0 0.0
    %2227 = vmatprep.subr.mxu0 0.0
    %2228 = vmatpush1.msra.mxu0 0.0
    %2229 = vmatprep.subr.mxu0 0.0
    %2230 = vmatpush1.msra.mxu0 0.0
    %2231 = vmatprep.subr.mxu0 0.0
    %2232 = vmatpush1.msra.mxu0 0.0
    %2233 = vmatprep.subr.mxu0 0.0
    %2234 = vmatpush1.msra.mxu0 0.0
    %2235 = vmatprep.subr.mxu0 0.0
    %2236 = vmatpush1.msra.mxu0 0.0
    %2237 = vmatprep.subr.mxu0 0.0
    %2238 = vmatpush1.msra.mxu0 0.0
    %2239 = vmatprep.subr.mxu0 0.0
    %2240 = vmatpush1.msra.mxu0 0.0
    %2241 = vmatprep.subr.mxu0 0.0
    %2242 = vmatpush1.msra.mxu0 0.0
    %2243 = vmatprep.subr.mxu0 0.0
    %2244 = vmatpush1.msra.mxu0 0.0
    %2245 = vmatprep.subr.mxu0 0.0
    %2246 = vmatpush1.msra.mxu0 0.0
    %2247 = vmatprep.subr.mxu0 0.0
    %2248 = vmatpush1.msra.mxu0 0.0
    %2249 = vmatprep.subr.mxu0 0.0
    %2250 = vmatpush1.msra.mxu0 0.0
    %2251 = vmatprep.subr.mxu0 0.0
    %2252 = vmatpush1.msra.mxu0 0.0
    %2253 = vmatprep.subr.mxu0 0.0
    %2254 = vmatpush1.msra.mxu0 0.0
    %2255 = vmatprep.subr.mxu0 0.0
    %2256 = vmatpush1.msra.mxu0 0.0
    %2257 = vmatprep.subr.mxu0 0.0
    %2258 = vmatpush1.msra.mxu0 0.0
    %2259 = vmatprep.subr.mxu0 0.0
    %2260 = vmatpush1.msra.mxu0 0.0
    %2261 = vmatprep.mubr.f32.mxu0 0.0
    %2262 = vmatmul.mubr.f32.gmra.mrb[0].mxu0 %v2195
    %v2263 = vpop.f32.mrb[0].mxu0
    %v2264 = vadd.f32 0.0, %v2263
    %v2265 = vpop.f32.mrb[0].mxu0
    %2266 = vdwg.mxu0
    %2268 = vrot.lane.b32.xlu0 %v2191, 32
    %v2269 = vpop.permute.xlu0 %2268
    %v2270 = vsel %vm57, %v2269, 0
    %2272 = vmatprep.subr.mxu0 0.0
    %2273 = vmatpush1.msra.mxu0 %v197
    %2274 = vmatprep.subr.mxu0 0.0
    %2275 = vmatpush1.msra.mxu0 %v198
    %2276 = vmatprep.subr.mxu0 0.0
    %2277 = vmatpush1.msra.mxu0 %v199
    %2278 = vmatprep.subr.mxu0 0.0
    %2279 = vmatpush1.msra.mxu0 %v200
    %2280 = vmatprep.subr.mxu0 0.0
    %2281 = vmatpush1.msra.mxu0 0.0
    %2282 = vmatprep.subr.mxu0 0.0
    %2283 = vmatpush1.msra.mxu0 0.0
    %2284 = vmatprep.subr.mxu0 0.0
    %2285 = vmatpush1.msra.mxu0 0.0
    %2286 = vmatprep.subr.mxu0 0.0
    %2287 = vmatpush1.msra.mxu0 0.0
    %2288 = vmatprep.subr.mxu0 0.0
    %2289 = vmatpush1.msra.mxu0 0.0
    %2290 = vmatprep.subr.mxu0 0.0
    %2291 = vmatpush1.msra.mxu0 0.0
    %2292 = vmatprep.subr.mxu0 0.0
    %2293 = vmatpush1.msra.mxu0 0.0
    %2294 = vmatprep.subr.mxu0 0.0
    %2295 = vmatpush1.msra.mxu0 0.0
    %2296 = vmatprep.subr.mxu0 0.0
    %2297 = vmatpush1.msra.mxu0 0.0
    %2298 = vmatprep.subr.mxu0 0.0
    %2299 = vmatpush1.msra.mxu0 0.0
    %2300 = vmatprep.subr.mxu0 0.0
    %2301 = vmatpush1.msra.mxu0 0.0
    %2302 = vmatprep.subr.mxu0 0.0
    %2303 = vmatpush1.msra.mxu0 0.0
    %2304 = vmatprep.subr.mxu0 0.0
    %2305 = vmatpush1.msra.mxu0 0.0
    %2306 = vmatprep.subr.mxu0 0.0
    %2307 = vmatpush1.msra.mxu0 0.0
    %2308 = vmatprep.subr.mxu0 0.0
    %2309 = vmatpush1.msra.mxu0 0.0
    %2310 = vmatprep.subr.mxu0 0.0
    %2311 = vmatpush1.msra.mxu0 0.0
    %2312 = vmatprep.subr.mxu0 0.0
    %2313 = vmatpush1.msra.mxu0 0.0
    %2314 = vmatprep.subr.mxu0 0.0
    %2315 = vmatpush1.msra.mxu0 0.0
    %2316 = vmatprep.subr.mxu0 0.0
    %2317 = vmatpush1.msra.mxu0 0.0
    %2318 = vmatprep.subr.mxu0 0.0
    %2319 = vmatpush1.msra.mxu0 0.0
    %2320 = vmatprep.subr.mxu0 0.0
    %2321 = vmatpush1.msra.mxu0 0.0
    %2322 = vmatprep.subr.mxu0 0.0
    %2323 = vmatpush1.msra.mxu0 0.0
    %2324 = vmatprep.subr.mxu0 0.0
    %2325 = vmatpush1.msra.mxu0 0.0
    %2326 = vmatprep.subr.mxu0 0.0
    %2327 = vmatpush1.msra.mxu0 0.0
    %2328 = vmatprep.subr.mxu0 0.0
    %2329 = vmatpush1.msra.mxu0 0.0
    %2330 = vmatprep.subr.mxu0 0.0
    %2331 = vmatpush1.msra.mxu0 0.0
    %2332 = vmatprep.subr.mxu0 0.0
    %2333 = vmatpush1.msra.mxu0 0.0
    %2334 = vmatprep.subr.mxu0 0.0
    %2335 = vmatpush1.msra.mxu0 0.0
    %2336 = vmatprep.mubr.f32.mxu0 0.0
    %2337 = vmatmul.mubr.f32.gmra.mrb[0].mxu0 %v2270
    %v2338 = vpop.f32.mrb[0].mxu0
    %v2339 = vadd.f32 %v2264, %v2338
    %v2340 = vpop.f32.mrb[0].mxu0
    %2341 = vdwg.mxu0
    %v2342 = vadd.f32 %v2339, %v450
    %v2343 = vxor.u32 %v2342, 2147483648
    %v2344 = vmul.f32 %v2343, 1.442695
    %v2345 = vpow.pop %v2344
    %v2346 = vadd.f32 %v2345, 1.0
    %v2347 = vrcp.pop %v2346
    %v2348 = vmul.f32 1.0, %v2347
    %v2349 = vtanh.pop %v2342
    %v2350 = vmul.f32 %v2348, %v2090
    %2352 = vrot.lane.b32.xlu0 %v2349, 64
    %v2353 = vpop.permute.xlu0 %2352
    %v2355 = vmul.f32 %v2348, %v2353
    %2357 = vrot.lane.b32.xlu0 %v2355, 32
    %v2358 = vpop.permute.xlu0 %2357
    %v2360 = vadd.f32 %v2350, %v2358
    %v2361 = vtanh.pop %v2360
    %2363 = vrot.lane.b32.xlu0 %v2361, 64
    %v2364 = vpop.permute.xlu0 %2363
    %v2366 = vmul.f32 %v2348, %v2364
    %v2367 = vld [vmem:[%s4] sm:$0xff]
    %v2368 = vld [vmem:[%s4 + $0x8] sm:$0xff]
    %v2369 = vld [vmem:[%s4 + $0x10] sm:$0xff]
    %v2370 = vld [vmem:[%s4 + $0x18] sm:$0xff]
    %v2371 = vld [vmem:[%s5] sm:$0xff]
    %2373 = vrot.lane.b32.xlu0 %v2366, 32
    %v2374 = vpop.permute.xlu0 %2373
    %v2375 = vsel %vm57, %v2374, 0
    %2377 = vmatprep.subr.mxu0 0.0
    %2378 = vmatpush1.msra.mxu0 %v2367
    %2379 = vmatprep.subr.mxu0 0.0
    %2380 = vmatpush1.msra.mxu0 %v2368
    %2381 = vmatprep.subr.mxu0 0.0
    %2382 = vmatpush1.msra.mxu0 %v2369
    %2383 = vmatprep.subr.mxu0 0.0
    %2384 = vmatpush1.msra.mxu0 %v2370
    %2385 = vmatprep.subr.mxu0 0.0
    %2386 = vmatpush1.msra.mxu0 0.0
    %2387 = vmatprep.subr.mxu0 0.0
    %2388 = vmatpush1.msra.mxu0 0.0
    %2389 = vmatprep.subr.mxu0 0.0
    %2390 = vmatpush1.msra.mxu0 0.0
    %2391 = vmatprep.subr.mxu0 0.0
    %2392 = vmatpush1.msra.mxu0 0.0
    %2393 = vmatprep.subr.mxu0 0.0
    %2394 = vmatpush1.msra.mxu0 0.0
    %2395 = vmatprep.subr.mxu0 0.0
    %2396 = vmatpush1.msra.mxu0 0.0
    %2397 = vmatprep.subr.mxu0 0.0
    %2398 = vmatpush1.msra.mxu0 0.0
    %2399 = vmatprep.subr.mxu0 0.0
    %2400 = vmatpush1.msra.mxu0 0.0
    %2401 = vmatprep.subr.mxu0 0.0
    %2402 = vmatpush1.msra.mxu0 0.0
    %2403 = vmatprep.subr.mxu0 0.0
    %2404 = vmatpush1.msra.mxu0 0.0
    %2405 = vmatprep.subr.mxu0 0.0
    %2406 = vmatpush1.msra.mxu0 0.0
    %2407 = vmatprep.subr.mxu0 0.0
    %2408 = vmatpush1.msra.mxu0 0.0
    %2409 = vmatprep.subr.mxu0 0.0
    %2410 = vmatpush1.msra.mxu0 0.0
    %2411 = vmatprep.subr.mxu0 0.0
    %2412 = vmatpush1.msra.mxu0 0.0
    %2413 = vmatprep.subr.mxu0 0.0
    %2414 = vmatpush1.msra.mxu0 0.0
    %2415 = vmatprep.subr.mxu0 0.0
    %2416 = vmatpush1.msra.mxu0 0.0
    %2417 = vmatprep.subr.mxu0 0.0
    %2418 = vmatpush1.msra.mxu0 0.0
    %2419 = vmatprep.subr.mxu0 0.0
    %2420 = vmatpush1.msra.mxu0 0.0
    %2421 = vmatprep.subr.mxu0 0.0
    %2422 = vmatpush1.msra.mxu0 0.0
    %2423 = vmatprep.subr.mxu0 0.0
    %2424 = vmatpush1.msra.mxu0 0.0
    %2425 = vmatprep.subr.mxu0 0.0
    %2426 = vmatpush1.msra.mxu0 0.0
    %2427 = vmatprep.subr.mxu0 0.0
    %2428 = vmatpush1.msra.mxu0 0.0
    %2429 = vmatprep.subr.mxu0 0.0
    %2430 = vmatpush1.msra.mxu0 0.0
    %2431 = vmatprep.subr.mxu0 0.0
    %2432 = vmatpush1.msra.mxu0 0.0
    %2433 = vmatprep.subr.mxu0 0.0
    %2434 = vmatpush1.msra.mxu0 0.0
    %2435 = vmatprep.subr.mxu0 0.0
    %2436 = vmatpush1.msra.mxu0 0.0
    %2437 = vmatprep.subr.mxu0 0.0
    %2438 = vmatpush1.msra.mxu0 0.0
    %2439 = vmatprep.subr.mxu0 0.0
    %2440 = vmatpush1.msra.mxu0 0.0
    %2441 = vmatprep.mubr.f32.mxu0 0.0
    %2442 = vmatmul.mubr.f32.gmra.mrb[0].mxu0 %v2375
    %v2443 = vpop.f32.mrb[0].mxu0
    %v2444 = vadd.f32 %v2371, %v2443
    %v2445 = vpop.f32.mrb[0].mxu0
    %2446 = vdwg.mxu0
    %2447 = vst [vmem:[#allocation5] sm:$0xff] %v2444
    // Predicated region
    $region30: #{tpu_custom_call.1} parent=1 // pred_check
      _
    $region31: #{tpu_custom_call.1} parent=1 // pred_check_branch
      %2449 = sbr.rel (0) target = $region33
    $region32: #{tpu_custom_call.1} parent=1 // pred_region
      %s2451 = ssub.s32 128, 128
      %2452 = vsyncadd [#allocation4], %s2451
      %s2454 = sshll.u32 [#allocation5], 4
      %s2455 = int_to_ptr.vmem [resolvable:$true] %s2454
      %2457 = dma.vmem_to_hbm [thread:$0]  %s2455, 128, %s6, [#allocation4]
    $region33: #{tpu_custom_call.1} parent=1 // pred_fallthru
      _
    // Predicated region
    $region34: #{tpu_custom_call.1} parent=1 // pred_check
      _
    $region35: #{tpu_custom_call.1} parent=1 // pred_check_branch
      %2459 = sbr.rel (0) target = $region37
    $region36: #{tpu_custom_call.1} parent=1 // pred_region
      %2460 = dma.done [#allocation4], 128
    $region37: #{tpu_custom_call.1} parent=1 // pred_fallthru
      _
    %2461 = vsyncpa [#allocation3], 1
    %2462 = vsyncpa [#allocation4], 1

</llo_original>
